<compile_context>
chip_gen: v5e
topology: v5e:2x2
jax: 0.10.0
libtpu: 0.0.40
codegen_flags: <defaults>
</compile_context>

<pallas_src>
import jax
import jax.numpy as jnp
from jax import lax
from jax.experimental import pallas as pl
from jax.experimental.pallas import tpu as pltpu


def lstm_soc_kernel(x_ref, w_ih_ref, w_hh_ref, b_ref, fc_w_ref, fc_b_ref,
                    out_ref, gx_ref):
    """All operands are whole arrays resident in VMEM (no grid).

    x_ref    : (T*B_pad, I)   time-major, batch-padded, flattened input
    w_ih_ref : (I, 4H)        input->gate weights   (g block pre-scaled by 2)
    w_hh_ref : (H, 4H)        hidden->gate weights  (g block pre-scaled by 2)
    b_ref    : (1, 4H)        b_ih + b_hh           (g block pre-scaled by 2)
    fc_w_ref : (1, H)         final linear weight row
    fc_b_ref : (1, 1)         final linear bias
    out_ref  : (B_pad, 1)     SOC prediction (padded rows discarded by wrapper)
    gx_ref   : (T*B_pad, 4H)  VMEM scratch: hoisted input projection
    """
    B_pad = out_ref.shape[0]
    T = x_ref.shape[0] // B_pad
    H = w_hh_ref.shape[0]
    highest = lax.Precision.HIGHEST

    # ---- hoisted input projection: ONE MXU matmul for all T steps, with the
    #      bias folded in here so the recurrence has no per-step bias add. ----
    gx_ref[...] = (
        jnp.dot(x_ref[...], w_ih_ref[...], precision=highest,
                preferred_element_type=jnp.float32)
        + b_ref[...]
    )

    w_hh = w_hh_ref[...]                      # (H, 4H), hoisted load

    h = jnp.zeros((B_pad, H), jnp.float32)
    c = jnp.zeros((B_pad, H), jnp.float32)

    # ---- fully-unrolled recurrence (T is a static Python int = 8) ----
    for t in range(T):
        # static, sublane-aligned (B_pad = 8) slice of the precomputed gates
        gates = gx_ref[pl.ds(t * B_pad, B_pad), :] + jnp.dot(
            h, w_hh, precision=highest, preferred_element_type=jnp.float32)
        # single full-vreg EUP pass (g lanes were pre-scaled by 2 in the weights)
        s = jax.nn.sigmoid(gates)                   # (B_pad, 4H)
        i_g = s[:, 0 * H:1 * H]
        f_g = s[:, 1 * H:2 * H]
        g_g = 2.0 * s[:, 2 * H:3 * H] - 1.0         # == tanh(g pre-activation)
        o_g = s[:, 3 * H:4 * H]
        c = f_g * c + i_g * g_g
        h = o_g * jnp.tanh(c)

    # ---- final FC on the VPU + lane reduce (no N=1 MXU matmul) ----
    out_ref[...] = (
        jnp.sum(h * fc_w_ref[...], axis=1, keepdims=True) + fc_b_ref[...]
    )


def lstm_soc_forward(x, packed):
    """x: (batch, seq, input_size) float32 -> (batch,) float32."""
    B, T, I = x.shape
    H = packed["w_hh_t"].shape[0]
    assert packed["w_ih_t"].shape == (I, 4 * H)
    B_pad = ((max(B, 1) + 7) // 8) * 8          # pad batch to full sublane groups

    # time-major + batch-pad + flatten (tiny, KB-scale XLA-side reshuffle; kept
    # outside the kernel so all in-kernel shapes are perfectly (8,128)-aligned).
    x_tm = jnp.transpose(x, (1, 0, 2)).astype(jnp.float32)      # (T, B, I)
    x_tm = jnp.pad(x_tm, ((0, 0), (0, B_pad - B), (0, 0)))      # (T, B_pad, I)
    x_flat = x_tm.reshape(T * B_pad, I)                         # (T*B_pad, I)

    vmem = pl.BlockSpec(memory_space=pltpu.MemorySpace.VMEM)
    out = pl.pallas_call(
        lstm_soc_kernel,
        out_shape=jax.ShapeDtypeStruct((B_pad, 1), jnp.float32),
        in_specs=[vmem] * 6,
        out_specs=vmem,
        scratch_shapes=[pltpu.VMEM((T * B_pad, 4 * H), jnp.float32)],
    )(x_flat, packed["w_ih_t"], packed["w_hh_t"], packed["b"],
      packed["fc_w"], packed["fc_b"])
    return out[:B, 0]                            # drop padded rows, squeeze(-1)


def init_params(key, input_size=3, hidden_size=32):
    """Deterministic synthetic params with PyTorch LSTM/Linear shapes, gate order [i,f,g,o]."""
    H, I = hidden_size, input_size
    k = 1.0 / jnp.sqrt(jnp.float32(H))
    ks = jax.random.split(key, 6)
    return {
        "weight_ih_l0": jax.random.uniform(ks[0], (4 * H, I), jnp.float32, -k, k),
        "weight_hh_l0": jax.random.uniform(ks[1], (4 * H, H), jnp.float32, -k, k),
        "bias_ih_l0":   jax.random.uniform(ks[2], (4 * H,), jnp.float32, -k, k),
        "bias_hh_l0":   jax.random.uniform(ks[3], (4 * H,), jnp.float32, -k, k),
        "fc_weight":    jax.random.uniform(ks[4], (1, H), jnp.float32, -k, k),
        "fc_bias":      jax.random.uniform(ks[5], (1,), jnp.float32, -k, k),
    }


def pack_params(raw):
    """Pack PyTorch-layout params into the kernel layout.

    One-time weight packing: transpose for right-multiplication, combine the two
    biases, and pre-scale the g-gate block by 2 so the kernel can use a single
    full-width sigmoid pass and recover tanh(z) as 2*sigmoid(2z) - 1.
    """
    H = raw["weight_hh_l0"].shape[1]
    scale = jnp.ones((1, 4 * H), jnp.float32).at[:, 2 * H:3 * H].set(2.0)
    b = (raw["bias_ih_l0"] + raw["bias_hh_l0"]).reshape(1, 4 * H)
    return {
        "w_ih_t": raw["weight_ih_l0"].T * scale,        # (I, 4H)
        "w_hh_t": raw["weight_hh_l0"].T * scale,        # (H, 4H)
        "b": b * scale,                                 # (1, 4H)
        "fc_w": raw["fc_weight"],                       # (1, H)
        "fc_b": raw["fc_bias"].reshape(1, 1),           # (1, 1)
    }


def lstm_soc_reference(x, raw):
    """Pure-JAX reference matching torch.nn.LSTM + Linear semantics."""
    H = raw["weight_hh_l0"].shape[1]
    w_ih_t = raw["weight_ih_l0"].T
    w_hh_t = raw["weight_hh_l0"].T
    b = (raw["bias_ih_l0"] + raw["bias_hh_l0"])[None, :]
    hi = lax.Precision.HIGHEST

    def cell(carry, x_t):
        h, c = carry
        gates = (jnp.dot(x_t, w_ih_t, precision=hi)
                 + jnp.dot(h, w_hh_t, precision=hi) + b)
        i_g = jax.nn.sigmoid(gates[:, 0 * H:1 * H])
        f_g = jax.nn.sigmoid(gates[:, 1 * H:2 * H])
        g_g = jnp.tanh(gates[:, 2 * H:3 * H])
        o_g = jax.nn.sigmoid(gates[:, 3 * H:4 * H])
        c_new = f_g * c + i_g * g_g
        h_new = o_g * jnp.tanh(c_new)
        return (h_new, c_new), None

    B = x.shape[0]
    h0 = jnp.zeros((B, H), jnp.float32)
    c0 = jnp.zeros((B, H), jnp.float32)
    (h_T, _), _ = lax.scan(cell, (h0, c0), jnp.transpose(x, (1, 0, 2)))
    return (jnp.dot(h_T, raw["fc_weight"].T, precision=hi) + raw["fc_bias"])[:, 0]


if __name__ == "__main__":
    key = jax.random.PRNGKey(0)
    k_param, k_x = jax.random.split(key)

    batch, seq, input_size, hidden_size = 4, 8, 3, 32
    raw = init_params(k_param, input_size=input_size, hidden_size=hidden_size)
    packed = pack_params(raw)
    x = jax.random.normal(k_x, (batch, seq, input_size), jnp.float32)

    soc_pred = jax.block_until_ready(lstm_soc_forward(x, packed))
    soc_ref = jax.block_until_ready(lstm_soc_reference(x, raw))

    assert soc_pred.shape == (batch,)
    assert jnp.allclose(soc_pred, soc_ref, atol=1e-5, rtol=1e-5), (soc_pred, soc_ref)
    print("KERNEL_OK")
</pallas_src>

<mosaic_0001>
module attributes {stable_mosaic.version = 11 : i64} {
  func.func @lstm_soc_kernel(%arg0: memref<64x3xf32, #tpu.memory_space<vmem>>, %arg1: memref<3x128xf32, #tpu.memory_space<vmem>>, %arg2: memref<32x128xf32, #tpu.memory_space<vmem>>, %arg3: memref<1x128xf32, #tpu.memory_space<vmem>>, %arg4: memref<1x32xf32, #tpu.memory_space<vmem>>, %arg5: memref<1x1xf32, #tpu.memory_space<vmem>>, %arg6: memref<8x1xf32, #tpu.memory_space<vmem>>, %arg7: memref<64x128xf32, #tpu.memory_space<vmem>>) attributes {dimension_semantics = [], scalar_prefetch = 0 : i64, scratch_operands = 1 : i64, tpu.core_type = #tpu.core_type<tc>} {
    %c0 = arith.constant 0 : index
    %c0_0 = arith.constant 0 : index
    %0 = vector.load %arg0[%c0, %c0_0] : memref<64x3xf32, #tpu.memory_space<vmem>>, vector<64x3xf32>
    %c0_1 = arith.constant 0 : index
    %c0_2 = arith.constant 0 : index
    %1 = vector.load %arg1[%c0_1, %c0_2] : memref<3x128xf32, #tpu.memory_space<vmem>>, vector<3x128xf32>
    %cst = arith.constant dense<0.000000e+00> : vector<64x128xf32>
    %2 = tpu.matmul %0, %1, %cst {dimension_numbers = #tpu.dot_dimension_numbers<[1], [0], [0], [1], [0, 0, 1, 1], [], []>, precision = #tpu.contract_precision<fp32>} : vector<64x3xf32>, vector<3x128xf32>, vector<64x128xf32> -> vector<64x128xf32>
    %c0_3 = arith.constant 0 : index
    %c0_4 = arith.constant 0 : index
    %3 = vector.load %arg3[%c0_3, %c0_4] : memref<1x128xf32, #tpu.memory_space<vmem>>, vector<1x128xf32>
    %4 = vector.broadcast %3 : vector<1x128xf32> to vector<64x128xf32>
    %5 = arith.addf %2, %4 : vector<64x128xf32>
    %c0_5 = arith.constant 0 : index
    %c0_6 = arith.constant 0 : index
    %6 = vector.load %arg7[%c0_5, %c0_6] : memref<64x128xf32, #tpu.memory_space<vmem>>, vector<64x128xf32>
    tpu.vector_store %arg7[%c0_5, %c0_6], %5 {strides = array<i32>} : memref<64x128xf32, #tpu.memory_space<vmem>>, vector<64x128xf32>,
    %c0_7 = arith.constant 0 : index
    %c0_8 = arith.constant 0 : index
    %7 = vector.load %arg2[%c0_7, %c0_8] : memref<32x128xf32, #tpu.memory_space<vmem>>, vector<32x128xf32>
    %cst_9 = arith.constant 0.000000e+00 : f32
    %8 = vector.broadcast %cst_9 : f32 to vector<8x32xf32>
    %cst_10 = arith.constant 0.000000e+00 : f32
    %9 = vector.broadcast %cst_10 : f32 to vector<8x32xf32>
    %c0_11 = arith.constant 0 : index
    %c0_12 = arith.constant 0 : index
    %10 = vector.load %arg7[%c0_11, %c0_12] : memref<64x128xf32, #tpu.memory_space<vmem>>, vector<8x128xf32>
    %cst_13 = arith.constant dense<0.000000e+00> : vector<8x128xf32>
    %11 = tpu.matmul %8, %7, %cst_13 {dimension_numbers = #tpu.dot_dimension_numbers<[1], [0], [0], [1], [0, 0, 1, 1], [], []>, precision = #tpu.contract_precision<fp32>} : vector<8x32xf32>, vector<32x128xf32>, vector<8x128xf32> -> vector<8x128xf32>
    %12 = arith.addf %10, %11 : vector<8x128xf32>
    %13 = arith.negf %12 : vector<8x128xf32>
    %14 = math.exp %13 : vector<8x128xf32>
    %cst_14 = arith.constant 1.000000e+00 : f32
    %15 = vector.broadcast %cst_14 : f32 to vector<8x128xf32>
    %16 = arith.addf %15, %14 : vector<8x128xf32>
    %17 = arith.divf %15, %16 : vector<8x128xf32>
    %18 = vector.extract_strided_slice %17 {offsets = [0, 0], sizes = [8, 32], strides = [1, 1]} : vector<8x128xf32> to vector<8x32xf32>
    %19 = vector.extract_strided_slice %17 {offsets = [0, 32], sizes = [8, 32], strides = [1, 1]} : vector<8x128xf32> to vector<8x32xf32>
    %20 = vector.extract_strided_slice %17 {offsets = [0, 64], sizes = [8, 32], strides = [1, 1]} : vector<8x128xf32> to vector<8x32xf32>
    %cst_15 = arith.constant 2.000000e+00 : f32
    %21 = vector.broadcast %cst_15 : f32 to vector<8x32xf32>
    %22 = arith.mulf %21, %20 : vector<8x32xf32>
    %cst_16 = arith.constant 1.000000e+00 : f32
    %23 = vector.broadcast %cst_16 : f32 to vector<8x32xf32>
    %24 = arith.subf %22, %23 : vector<8x32xf32>
    %25 = vector.extract_strided_slice %17 {offsets = [0, 96], sizes = [8, 32], strides = [1, 1]} : vector<8x128xf32> to vector<8x32xf32>
    %26 = arith.mulf %19, %9 : vector<8x32xf32>
    %27 = arith.mulf %18, %24 : vector<8x32xf32>
    %28 = arith.addf %26, %27 : vector<8x32xf32>
    %29 = math.tanh %28 : vector<8x32xf32>
    %30 = arith.mulf %25, %29 : vector<8x32xf32>
    %c8 = arith.constant 8 : index
    %c0_17 = arith.constant 0 : index
    %31 = vector.load %arg7[%c8, %c0_17] : memref<64x128xf32, #tpu.memory_space<vmem>>, vector<8x128xf32>
    %cst_18 = arith.constant dense<0.000000e+00> : vector<8x128xf32>
    %32 = tpu.matmul %30, %7, %cst_18 {dimension_numbers = #tpu.dot_dimension_numbers<[1], [0], [0], [1], [0, 0, 1, 1], [], []>, precision = #tpu.contract_precision<fp32>} : vector<8x32xf32>, vector<32x128xf32>, vector<8x128xf32> -> vector<8x128xf32>
    %33 = arith.addf %31, %32 : vector<8x128xf32>
    %34 = arith.negf %33 : vector<8x128xf32>
    %35 = math.exp %34 : vector<8x128xf32>
    %cst_19 = arith.constant 1.000000e+00 : f32
    %36 = vector.broadcast %cst_19 : f32 to vector<8x128xf32>
    %37 = arith.addf %36, %35 : vector<8x128xf32>
    %38 = arith.divf %36, %37 : vector<8x128xf32>
    %39 = vector.extract_strided_slice %38 {offsets = [0, 0], sizes = [8, 32], strides = [1, 1]} : vector<8x128xf32> to vector<8x32xf32>
    %40 = vector.extract_strided_slice %38 {offsets = [0, 32], sizes = [8, 32], strides = [1, 1]} : vector<8x128xf32> to vector<8x32xf32>
    %41 = vector.extract_strided_slice %38 {offsets = [0, 64], sizes = [8, 32], strides = [1, 1]} : vector<8x128xf32> to vector<8x32xf32>
    %cst_20 = arith.constant 2.000000e+00 : f32
    %42 = vector.broadcast %cst_20 : f32 to vector<8x32xf32>
    %43 = arith.mulf %42, %41 : vector<8x32xf32>
    %cst_21 = arith.constant 1.000000e+00 : f32
    %44 = vector.broadcast %cst_21 : f32 to vector<8x32xf32>
    %45 = arith.subf %43, %44 : vector<8x32xf32>
    %46 = vector.extract_strided_slice %38 {offsets = [0, 96], sizes = [8, 32], strides = [1, 1]} : vector<8x128xf32> to vector<8x32xf32>
    %47 = arith.mulf %40, %28 : vector<8x32xf32>
    %48 = arith.mulf %39, %45 : vector<8x32xf32>
    %49 = arith.addf %47, %48 : vector<8x32xf32>
    %50 = math.tanh %49 : vector<8x32xf32>
    %51 = arith.mulf %46, %50 : vector<8x32xf32>
    %c16 = arith.constant 16 : index
    %c0_22 = arith.constant 0 : index
    %52 = vector.load %arg7[%c16, %c0_22] : memref<64x128xf32, #tpu.memory_space<vmem>>, vector<8x128xf32>
    %cst_23 = arith.constant dense<0.000000e+00> : vector<8x128xf32>
    %53 = tpu.matmul %51, %7, %cst_23 {dimension_numbers = #tpu.dot_dimension_numbers<[1], [0], [0], [1], [0, 0, 1, 1], [], []>, precision = #tpu.contract_precision<fp32>} : vector<8x32xf32>, vector<32x128xf32>, vector<8x128xf32> -> vector<8x128xf32>
    %54 = arith.addf %52, %53 : vector<8x128xf32>
    %55 = arith.negf %54 : vector<8x128xf32>
    %56 = math.exp %55 : vector<8x128xf32>
    %cst_24 = arith.constant 1.000000e+00 : f32
    %57 = vector.broadcast %cst_24 : f32 to vector<8x128xf32>
    %58 = arith.addf %57, %56 : vector<8x128xf32>
    %59 = arith.divf %57, %58 : vector<8x128xf32>
    %60 = vector.extract_strided_slice %59 {offsets = [0, 0], sizes = [8, 32], strides = [1, 1]} : vector<8x128xf32> to vector<8x32xf32>
    %61 = vector.extract_strided_slice %59 {offsets = [0, 32], sizes = [8, 32], strides = [1, 1]} : vector<8x128xf32> to vector<8x32xf32>
    %62 = vector.extract_strided_slice %59 {offsets = [0, 64], sizes = [8, 32], strides = [1, 1]} : vector<8x128xf32> to vector<8x32xf32>
    %cst_25 = arith.constant 2.000000e+00 : f32
    %63 = vector.broadcast %cst_25 : f32 to vector<8x32xf32>
    %64 = arith.mulf %63, %62 : vector<8x32xf32>
    %cst_26 = arith.constant 1.000000e+00 : f32
    %65 = vector.broadcast %cst_26 : f32 to vector<8x32xf32>
    %66 = arith.subf %64, %65 : vector<8x32xf32>
    %67 = vector.extract_strided_slice %59 {offsets = [0, 96], sizes = [8, 32], strides = [1, 1]} : vector<8x128xf32> to vector<8x32xf32>
    %68 = arith.mulf %61, %49 : vector<8x32xf32>
    %69 = arith.mulf %60, %66 : vector<8x32xf32>
    %70 = arith.addf %68, %69 : vector<8x32xf32>
    %71 = math.tanh %70 : vector<8x32xf32>
    %72 = arith.mulf %67, %71 : vector<8x32xf32>
    %c24 = arith.constant 24 : index
    %c0_27 = arith.constant 0 : index
    %73 = vector.load %arg7[%c24, %c0_27] : memref<64x128xf32, #tpu.memory_space<vmem>>, vector<8x128xf32>
    %cst_28 = arith.constant dense<0.000000e+00> : vector<8x128xf32>
    %74 = tpu.matmul %72, %7, %cst_28 {dimension_numbers = #tpu.dot_dimension_numbers<[1], [0], [0], [1], [0, 0, 1, 1], [], []>, precision = #tpu.contract_precision<fp32>} : vector<8x32xf32>, vector<32x128xf32>, vector<8x128xf32> -> vector<8x128xf32>
    %75 = arith.addf %73, %74 : vector<8x128xf32>
    %76 = arith.negf %75 : vector<8x128xf32>
    %77 = math.exp %76 : vector<8x128xf32>
    %cst_29 = arith.constant 1.000000e+00 : f32
    %78 = vector.broadcast %cst_29 : f32 to vector<8x128xf32>
    %79 = arith.addf %78, %77 : vector<8x128xf32>
    %80 = arith.divf %78, %79 : vector<8x128xf32>
    %81 = vector.extract_strided_slice %80 {offsets = [0, 0], sizes = [8, 32], strides = [1, 1]} : vector<8x128xf32> to vector<8x32xf32>
    %82 = vector.extract_strided_slice %80 {offsets = [0, 32], sizes = [8, 32], strides = [1, 1]} : vector<8x128xf32> to vector<8x32xf32>
    %83 = vector.extract_strided_slice %80 {offsets = [0, 64], sizes = [8, 32], strides = [1, 1]} : vector<8x128xf32> to vector<8x32xf32>
    %cst_30 = arith.constant 2.000000e+00 : f32
    %84 = vector.broadcast %cst_30 : f32 to vector<8x32xf32>
    %85 = arith.mulf %84, %83 : vector<8x32xf32>
    %cst_31 = arith.constant 1.000000e+00 : f32
    %86 = vector.broadcast %cst_31 : f32 to vector<8x32xf32>
    %87 = arith.subf %85, %86 : vector<8x32xf32>
    %88 = vector.extract_strided_slice %80 {offsets = [0, 96], sizes = [8, 32], strides = [1, 1]} : vector<8x128xf32> to vector<8x32xf32>
    %89 = arith.mulf %82, %70 : vector<8x32xf32>
    %90 = arith.mulf %81, %87 : vector<8x32xf32>
    %91 = arith.addf %89, %90 : vector<8x32xf32>
    %92 = math.tanh %91 : vector<8x32xf32>
    %93 = arith.mulf %88, %92 : vector<8x32xf32>
    %c32 = arith.constant 32 : index
    %c0_32 = arith.constant 0 : index
    %94 = vector.load %arg7[%c32, %c0_32] : memref<64x128xf32, #tpu.memory_space<vmem>>, vector<8x128xf32>
    %cst_33 = arith.constant dense<0.000000e+00> : vector<8x128xf32>
    %95 = tpu.matmul %93, %7, %cst_33 {dimension_numbers = #tpu.dot_dimension_numbers<[1], [0], [0], [1], [0, 0, 1, 1], [], []>, precision = #tpu.contract_precision<fp32>} : vector<8x32xf32>, vector<32x128xf32>, vector<8x128xf32> -> vector<8x128xf32>
    %96 = arith.addf %94, %95 : vector<8x128xf32>
    %97 = arith.negf %96 : vector<8x128xf32>
    %98 = math.exp %97 : vector<8x128xf32>
    %cst_34 = arith.constant 1.000000e+00 : f32
    %99 = vector.broadcast %cst_34 : f32 to vector<8x128xf32>
    %100 = arith.addf %99, %98 : vector<8x128xf32>
    %101 = arith.divf %99, %100 : vector<8x128xf32>
    %102 = vector.extract_strided_slice %101 {offsets = [0, 0], sizes = [8, 32], strides = [1, 1]} : vector<8x128xf32> to vector<8x32xf32>
    %103 = vector.extract_strided_slice %101 {offsets = [0, 32], sizes = [8, 32], strides = [1, 1]} : vector<8x128xf32> to vector<8x32xf32>
    %104 = vector.extract_strided_slice %101 {offsets = [0, 64], sizes = [8, 32], strides = [1, 1]} : vector<8x128xf32> to vector<8x32xf32>
    %cst_35 = arith.constant 2.000000e+00 : f32
    %105 = vector.broadcast %cst_35 : f32 to vector<8x32xf32>
    %106 = arith.mulf %105, %104 : vector<8x32xf32>
    %cst_36 = arith.constant 1.000000e+00 : f32
    %107 = vector.broadcast %cst_36 : f32 to vector<8x32xf32>
    %108 = arith.subf %106, %107 : vector<8x32xf32>
    %109 = vector.extract_strided_slice %101 {offsets = [0, 96], sizes = [8, 32], strides = [1, 1]} : vector<8x128xf32> to vector<8x32xf32>
    %110 = arith.mulf %103, %91 : vector<8x32xf32>
    %111 = arith.mulf %102, %108 : vector<8x32xf32>
    %112 = arith.addf %110, %111 : vector<8x32xf32>
    %113 = math.tanh %112 : vector<8x32xf32>
    %114 = arith.mulf %109, %113 : vector<8x32xf32>
    %c40 = arith.constant 40 : index
    %c0_37 = arith.constant 0 : index
    %115 = vector.load %arg7[%c40, %c0_37] : memref<64x128xf32, #tpu.memory_space<vmem>>, vector<8x128xf32>
    %cst_38 = arith.constant dense<0.000000e+00> : vector<8x128xf32>
    %116 = tpu.matmul %114, %7, %cst_38 {dimension_numbers = #tpu.dot_dimension_numbers<[1], [0], [0], [1], [0, 0, 1, 1], [], []>, precision = #tpu.contract_precision<fp32>} : vector<8x32xf32>, vector<32x128xf32>, vector<8x128xf32> -> vector<8x128xf32>
    %117 = arith.addf %115, %116 : vector<8x128xf32>
    %118 = arith.negf %117 : vector<8x128xf32>
    %119 = math.exp %118 : vector<8x128xf32>
    %cst_39 = arith.constant 1.000000e+00 : f32
    %120 = vector.broadcast %cst_39 : f32 to vector<8x128xf32>
    %121 = arith.addf %120, %119 : vector<8x128xf32>
    %122 = arith.divf %120, %121 : vector<8x128xf32>
    %123 = vector.extract_strided_slice %122 {offsets = [0, 0], sizes = [8, 32], strides = [1, 1]} : vector<8x128xf32> to vector<8x32xf32>
    %124 = vector.extract_strided_slice %122 {offsets = [0, 32], sizes = [8, 32], strides = [1, 1]} : vector<8x128xf32> to vector<8x32xf32>
    %125 = vector.extract_strided_slice %122 {offsets = [0, 64], sizes = [8, 32], strides = [1, 1]} : vector<8x128xf32> to vector<8x32xf32>
    %cst_40 = arith.constant 2.000000e+00 : f32
    %126 = vector.broadcast %cst_40 : f32 to vector<8x32xf32>
    %127 = arith.mulf %126, %125 : vector<8x32xf32>
    %cst_41 = arith.constant 1.000000e+00 : f32
    %128 = vector.broadcast %cst_41 : f32 to vector<8x32xf32>
    %129 = arith.subf %127, %128 : vector<8x32xf32>
    %130 = vector.extract_strided_slice %122 {offsets = [0, 96], sizes = [8, 32], strides = [1, 1]} : vector<8x128xf32> to vector<8x32xf32>
    %131 = arith.mulf %124, %112 : vector<8x32xf32>
    %132 = arith.mulf %123, %129 : vector<8x32xf32>
    %133 = arith.addf %131, %132 : vector<8x32xf32>
    %134 = math.tanh %133 : vector<8x32xf32>
    %135 = arith.mulf %130, %134 : vector<8x32xf32>
    %c48 = arith.constant 48 : index
    %c0_42 = arith.constant 0 : index
    %136 = vector.load %arg7[%c48, %c0_42] : memref<64x128xf32, #tpu.memory_space<vmem>>, vector<8x128xf32>
    %cst_43 = arith.constant dense<0.000000e+00> : vector<8x128xf32>
    %137 = tpu.matmul %135, %7, %cst_43 {dimension_numbers = #tpu.dot_dimension_numbers<[1], [0], [0], [1], [0, 0, 1, 1], [], []>, precision = #tpu.contract_precision<fp32>} : vector<8x32xf32>, vector<32x128xf32>, vector<8x128xf32> -> vector<8x128xf32>
    %138 = arith.addf %136, %137 : vector<8x128xf32>
    %139 = arith.negf %138 : vector<8x128xf32>
    %140 = math.exp %139 : vector<8x128xf32>
    %cst_44 = arith.constant 1.000000e+00 : f32
    %141 = vector.broadcast %cst_44 : f32 to vector<8x128xf32>
    %142 = arith.addf %141, %140 : vector<8x128xf32>
    %143 = arith.divf %141, %142 : vector<8x128xf32>
    %144 = vector.extract_strided_slice %143 {offsets = [0, 0], sizes = [8, 32], strides = [1, 1]} : vector<8x128xf32> to vector<8x32xf32>
    %145 = vector.extract_strided_slice %143 {offsets = [0, 32], sizes = [8, 32], strides = [1, 1]} : vector<8x128xf32> to vector<8x32xf32>
    %146 = vector.extract_strided_slice %143 {offsets = [0, 64], sizes = [8, 32], strides = [1, 1]} : vector<8x128xf32> to vector<8x32xf32>
    %cst_45 = arith.constant 2.000000e+00 : f32
    %147 = vector.broadcast %cst_45 : f32 to vector<8x32xf32>
    %148 = arith.mulf %147, %146 : vector<8x32xf32>
    %cst_46 = arith.constant 1.000000e+00 : f32
    %149 = vector.broadcast %cst_46 : f32 to vector<8x32xf32>
    %150 = arith.subf %148, %149 : vector<8x32xf32>
    %151 = vector.extract_strided_slice %143 {offsets = [0, 96], sizes = [8, 32], strides = [1, 1]} : vector<8x128xf32> to vector<8x32xf32>
    %152 = arith.mulf %145, %133 : vector<8x32xf32>
    %153 = arith.mulf %144, %150 : vector<8x32xf32>
    %154 = arith.addf %152, %153 : vector<8x32xf32>
    %155 = math.tanh %154 : vector<8x32xf32>
    %156 = arith.mulf %151, %155 : vector<8x32xf32>
    %c56 = arith.constant 56 : index
    %c0_47 = arith.constant 0 : index
    %157 = vector.load %arg7[%c56, %c0_47] : memref<64x128xf32, #tpu.memory_space<vmem>>, vector<8x128xf32>
    %cst_48 = arith.constant dense<0.000000e+00> : vector<8x128xf32>
    %158 = tpu.matmul %156, %7, %cst_48 {dimension_numbers = #tpu.dot_dimension_numbers<[1], [0], [0], [1], [0, 0, 1, 1], [], []>, precision = #tpu.contract_precision<fp32>} : vector<8x32xf32>, vector<32x128xf32>, vector<8x128xf32> -> vector<8x128xf32>
    %159 = arith.addf %157, %158 : vector<8x128xf32>
    %160 = arith.negf %159 : vector<8x128xf32>
    %161 = math.exp %160 : vector<8x128xf32>
    %cst_49 = arith.constant 1.000000e+00 : f32
    %162 = vector.broadcast %cst_49 : f32 to vector<8x128xf32>
    %163 = arith.addf %162, %161 : vector<8x128xf32>
    %164 = arith.divf %162, %163 : vector<8x128xf32>
    %165 = vector.extract_strided_slice %164 {offsets = [0, 0], sizes = [8, 32], strides = [1, 1]} : vector<8x128xf32> to vector<8x32xf32>
    %166 = vector.extract_strided_slice %164 {offsets = [0, 32], sizes = [8, 32], strides = [1, 1]} : vector<8x128xf32> to vector<8x32xf32>
    %167 = vector.extract_strided_slice %164 {offsets = [0, 64], sizes = [8, 32], strides = [1, 1]} : vector<8x128xf32> to vector<8x32xf32>
    %cst_50 = arith.constant 2.000000e+00 : f32
    %168 = vector.broadcast %cst_50 : f32 to vector<8x32xf32>
    %169 = arith.mulf %168, %167 : vector<8x32xf32>
    %cst_51 = arith.constant 1.000000e+00 : f32
    %170 = vector.broadcast %cst_51 : f32 to vector<8x32xf32>
    %171 = arith.subf %169, %170 : vector<8x32xf32>
    %172 = vector.extract_strided_slice %164 {offsets = [0, 96], sizes = [8, 32], strides = [1, 1]} : vector<8x128xf32> to vector<8x32xf32>
    %173 = arith.mulf %166, %154 : vector<8x32xf32>
    %174 = arith.mulf %165, %171 : vector<8x32xf32>
    %175 = arith.addf %173, %174 : vector<8x32xf32>
    %176 = math.tanh %175 : vector<8x32xf32>
    %177 = arith.mulf %172, %176 : vector<8x32xf32>
    %c0_52 = arith.constant 0 : index
    %c0_53 = arith.constant 0 : index
    %178 = vector.load %arg4[%c0_52, %c0_53] : memref<1x32xf32, #tpu.memory_space<vmem>>, vector<1x32xf32>
    %179 = vector.broadcast %178 : vector<1x32xf32> to vector<8x32xf32>
    %180 = arith.mulf %177, %179 : vector<8x32xf32>
    %cst_54 = arith.constant dense<0.000000e+00> : vector<8xf32>
    %181 = vector.multi_reduction <add>, %180, %cst_54 [1] : vector<8x32xf32> to vector<8xf32>
    %182 = vector.shape_cast %181 : vector<8xf32> to vector<8x1xf32>
    %c0_55 = arith.constant 0 : index
    %c0_56 = arith.constant 0 : index
    %183 = vector.load %arg5[%c0_55, %c0_56] : memref<1x1xf32, #tpu.memory_space<vmem>>, vector<1x1xf32>
    %184 = vector.broadcast %183 : vector<1x1xf32> to vector<8x1xf32>
    %185 = arith.addf %182, %184 : vector<8x1xf32>
    %c0_57 = arith.constant 0 : index
    %c0_58 = arith.constant 0 : index
    %186 = vector.load %arg6[%c0_57, %c0_58] : memref<8x1xf32, #tpu.memory_space<vmem>>, vector<8x1xf32>
    tpu.vector_store %arg6[%c0_57, %c0_58], %185 {strides = array<i32>} : memref<8x1xf32, #tpu.memory_space<vmem>>, vector<8x1xf32>,
    return
  }
}

</mosaic_0001>

<llo_original>
// kernel: tpu_custom_call.1
$region0: #{tpu_custom_call.1}
  #allocation0 [shape = 'u32[]', space=smem, size = 0x4, offset = 0x4, fixed_abs, tag = 'smem constant byte address 0x4 - core index']
  #allocation1 [shape = 'u32[72,128]{1,0:T(1,128)}', space=vmem, size = 0x9000, scoped, tag = 'internal scratch']
  #allocation2 [shape = 'f32[64,128]{1,0:T(8,128)}', space=vmem, size = 0x8000, scoped, tag = 'scratch operand']
  #allocation3 [shape = 'f32[1,1]{1,0:T(1,128)S(1)}', space=vmem, size = 0x200, scoped, tag = 'scoped memory for tpu_custom_call.1']
  %s0 = inlined_call_operand.vmem [shape: f32[64,3], index: 0, kind: input, shape index: {}]
  %s1 = inlined_call_operand.vmem [shape: f32[3,128], index: 1, kind: input, shape index: {}]
  %s2 = inlined_call_operand.vmem [shape: f32[32,128], index: 2, kind: input, shape index: {}]
  %s3 = inlined_call_operand.vmem [shape: f32[1,128], index: 3, kind: input, shape index: {}]
  %s4 = inlined_call_operand.vmem [shape: f32[1,32], index: 4, kind: input, shape index: {}]
  %s5 = inlined_call_operand.<no memory space> [shape: f32[1,1], index: 5, kind: input, shape index: {}]
  %s6 = inlined_call_operand.vmem [shape: f32[8,1], index: 6, kind: output, shape index: {}]
  %s7 = sld [smem:[#allocation0]]
  $region34: #{tpu_custom_call.1} parent=0
    _
  %s9 = ssub.s32 1, %s7
  %s10 = scalar_select 0, %s9, %s7
  %v11 = vstv %s5
  %12 = vst [vmem:[#allocation3] sm:$0x1] %v11
  // Predicated region
  $region2: #{tpu_custom_call.1} parent=0 // pred_check
    _
  $region3: #{tpu_custom_call.1} parent=0 // pred_check_branch
    %14 = sbr.rel (0) target = $region5
  $region4: #{tpu_custom_call.1} parent=0 // pred_region
    _
  $region5: #{tpu_custom_call.1} parent=0 // pred_fallthru
    _
  // Predicated region
  $region6: #{tpu_custom_call.1} parent=0 // pred_check
    _
  $region7: #{tpu_custom_call.1} parent=0 // pred_check_branch
    %16 = sbr.rel (0) target = $region9
  $region8: #{tpu_custom_call.1} parent=0 // pred_region
    _
  $region9: #{tpu_custom_call.1} parent=0 // pred_fallthru
    _
  // Predicated region
  $region10: #{tpu_custom_call.1} parent=0 // pred_check
    _
  $region11: #{tpu_custom_call.1} parent=0 // pred_check_branch
    %18 = sbr.rel (0) target = $region13
  $region12: #{tpu_custom_call.1} parent=0 // pred_region
    _
  $region13: #{tpu_custom_call.1} parent=0 // pred_fallthru
    _
  // Predicated region
  $region14: #{tpu_custom_call.1} parent=0 // pred_check
    _
  $region15: #{tpu_custom_call.1} parent=0 // pred_check_branch
    %20 = sbr.rel (0) target = $region17
  $region16: #{tpu_custom_call.1} parent=0 // pred_region
    _
  $region17: #{tpu_custom_call.1} parent=0 // pred_fallthru
    _
  // Predicated region
  $region18: #{tpu_custom_call.1} parent=0 // pred_check
    _
  $region19: #{tpu_custom_call.1} parent=0 // pred_check_branch
    %22 = sbr.rel (0) target = $region21
  $region20: #{tpu_custom_call.1} parent=0 // pred_region
    _
  $region21: #{tpu_custom_call.1} parent=0 // pred_fallthru
    _
  // Predicated region
  $region22: #{tpu_custom_call.1} parent=0 // pred_check
    _
  $region23: #{tpu_custom_call.1} parent=0 // pred_check_branch
    %24 = sbr.rel (0) target = $region25
  $region24: #{tpu_custom_call.1} parent=0 // pred_region
    _
  $region25: #{tpu_custom_call.1} parent=0 // pred_fallthru
    _
  %v25 = vld [vmem:[%s0] sm:$0xff]
  %v26 = vld [vmem:[%s0 + $0x8] sm:$0xff]
  %v27 = vld [vmem:[%s0 + $0x10] sm:$0xff]
  %v28 = vld [vmem:[%s0 + $0x18] sm:$0xff]
  %v29 = vld [vmem:[%s0 + $0x20] sm:$0xff]
  %v30 = vld [vmem:[%s0 + $0x28] sm:$0xff]
  %v31 = vld [vmem:[%s0 + $0x30] sm:$0xff]
  %v32 = vld [vmem:[%s0 + $0x38] sm:$0xff]
  %v33 = vld [vmem:[%s1] sm:$0x7]
  %v34 = vld [vmem:[%s3] sm:$0x1]
  %v36 = vperm.slane %v34, 0
  %vm38 = vcmask 23552
  %v40 = vsel %vm38, %v25, 0
  %v43 = vsel %vm38, %v26, 0
  %v46 = vsel %vm38, %v27, 0
  %v49 = vsel %vm38, %v28, 0
  %v52 = vsel %vm38, %v29, 0
  %v55 = vsel %vm38, %v30, 0
  %v58 = vsel %vm38, %v31, 0
  %v61 = vsel %vm38, %v32, 0
  %vm63 = vcmask 1042432
  %v65 = vsel %vm63, %v33, 0
  %67 = vmatpush.msra.mxu0 0.0
  %68 = vmatpush.msra.mxu0 0.0
  %69 = vmatpush.msra.mxu0 0.0
  %70 = vmatpush.msra.mxu0 0.0
  %71 = vmatpush.msra.mxu0 0.0
  %72 = vmatpush.msra.mxu0 0.0
  %73 = vmatpush.msra.mxu0 0.0
  %74 = vmatpush.msra.mxu0 0.0
  %75 = vmatpush.msra.mxu0 0.0
  %76 = vmatpush.msra.mxu0 0.0
  %77 = vmatpush.msra.mxu0 0.0
  %78 = vmatpush.msra.mxu0 0.0
  %79 = vmatpush.msra.mxu0 0.0
  %80 = vmatpush.msra.mxu0 0.0
  %81 = vmatpush.msra.mxu0 0.0
  %v82 = vand.u32 %v65, 4294901760
  %83 = vmatpush.msra.mxu0 %v82
  %v84 = vand.u32 %v40, 4294901760
  %v85 = vsub.f32 %v40, %v84
  %v86 = vand.u32 %v85, 4294901760
  %v87 = vsub.f32 %v85, %v86
  %v88 = vand.u32 %v87, 4294901760
  %89 = vmatmul.f32.gmra.mxu0 %v88
  %v90 = vpop.f32.mrf.mxu0
  %v91 = vadd.f32 %v36, %v90
  %v92 = vand.u32 %v43, 4294901760
  %v93 = vsub.f32 %v43, %v92
  %v94 = vand.u32 %v93, 4294901760
  %v95 = vsub.f32 %v93, %v94
  %v96 = vand.u32 %v95, 4294901760
  %97 = vmatmul.f32.gmra.mxu0 %v96
  %v98 = vpop.f32.mrf.mxu0
  %v99 = vadd.f32 %v36, %v98
  %v100 = vand.u32 %v46, 4294901760
  %v101 = vsub.f32 %v46, %v100
  %v102 = vand.u32 %v101, 4294901760
  %v103 = vsub.f32 %v101, %v102
  %v104 = vand.u32 %v103, 4294901760
  %105 = vmatmul.f32.gmra.mxu0 %v104
  %v106 = vpop.f32.mrf.mxu0
  %v107 = vadd.f32 %v36, %v106
  %v108 = vand.u32 %v49, 4294901760
  %v109 = vsub.f32 %v49, %v108
  %v110 = vand.u32 %v109, 4294901760
  %v111 = vsub.f32 %v109, %v110
  %v112 = vand.u32 %v111, 4294901760
  %113 = vmatmul.f32.gmra.mxu0 %v112
  %v114 = vpop.f32.mrf.mxu0
  %v115 = vadd.f32 %v36, %v114
  %v116 = vand.u32 %v52, 4294901760
  %v117 = vsub.f32 %v52, %v116
  %v118 = vand.u32 %v117, 4294901760
  %v119 = vsub.f32 %v117, %v118
  %v120 = vand.u32 %v119, 4294901760
  %121 = vmatmul.f32.gmra.mxu0 %v120
  %v122 = vpop.f32.mrf.mxu0
  %v123 = vadd.f32 %v36, %v122
  %v124 = vand.u32 %v55, 4294901760
  %v125 = vsub.f32 %v55, %v124
  %v126 = vand.u32 %v125, 4294901760
  %v127 = vsub.f32 %v125, %v126
  %v128 = vand.u32 %v127, 4294901760
  %129 = vmatmul.f32.gmra.mxu0 %v128
  %v130 = vpop.f32.mrf.mxu0
  %v131 = vadd.f32 %v36, %v130
  %v132 = vand.u32 %v58, 4294901760
  %v133 = vsub.f32 %v58, %v132
  %v134 = vand.u32 %v133, 4294901760
  %v135 = vsub.f32 %v133, %v134
  %v136 = vand.u32 %v135, 4294901760
  %137 = vmatmul.f32.gmra.mxu0 %v136
  %v138 = vpop.f32.mrf.mxu0
  %v139 = vadd.f32 %v36, %v138
  %v140 = vand.u32 %v61, 4294901760
  %v141 = vsub.f32 %v61, %v140
  %v142 = vand.u32 %v141, 4294901760
  %v143 = vsub.f32 %v141, %v142
  %v144 = vand.u32 %v143, 4294901760
  %145 = vmatmul.f32.gmra.mxu0 %v144
  %v146 = vpop.f32.mrf.mxu0
  %v147 = vadd.f32 %v36, %v146
  %148 = vdwg.mxu0
  %149 = vmatpush.msra.mxu0 0.0
  %150 = vmatpush.msra.mxu0 0.0
  %151 = vmatpush.msra.mxu0 0.0
  %152 = vmatpush.msra.mxu0 0.0
  %153 = vmatpush.msra.mxu0 0.0
  %154 = vmatpush.msra.mxu0 0.0
  %155 = vmatpush.msra.mxu0 0.0
  %156 = vmatpush.msra.mxu0 0.0
  %157 = vmatpush.msra.mxu0 0.0
  %158 = vmatpush.msra.mxu0 0.0
  %159 = vmatpush.msra.mxu0 0.0
  %160 = vmatpush.msra.mxu0 0.0
  %161 = vmatpush.msra.mxu0 0.0
  %162 = vmatpush.msra.mxu0 0.0
  %163 = vmatpush.msra.mxu0 0.0
  %v164 = vand.u32 %v65, 4294901760
  %v165 = vsub.f32 %v65, %v164
  %v166 = vand.u32 %v165, 4294901760
  %v167 = vsub.f32 %v165, %v166
  %v168 = vand.u32 %v167, 4294901760
  %169 = vmatpush.msra.mxu0 %v168
  %v170 = vand.u32 %v40, 4294901760
  %171 = vmatmul.f32.gmra.mxu0 %v170
  %v172 = vpop.f32.mrf.mxu0
  %v173 = vadd.f32 %v91, %v172
  %v174 = vand.u32 %v43, 4294901760
  %175 = vmatmul.f32.gmra.mxu0 %v174
  %v176 = vpop.f32.mrf.mxu0
  %v177 = vadd.f32 %v99, %v176
  %v178 = vand.u32 %v46, 4294901760
  %179 = vmatmul.f32.gmra.mxu0 %v178
  %v180 = vpop.f32.mrf.mxu0
  %v181 = vadd.f32 %v107, %v180
  %v182 = vand.u32 %v49, 4294901760
  %183 = vmatmul.f32.gmra.mxu0 %v182
  %v184 = vpop.f32.mrf.mxu0
  %v185 = vadd.f32 %v115, %v184
  %v186 = vand.u32 %v52, 4294901760
  %187 = vmatmul.f32.gmra.mxu0 %v186
  %v188 = vpop.f32.mrf.mxu0
  %v189 = vadd.f32 %v123, %v188
  %v190 = vand.u32 %v55, 4294901760
  %191 = vmatmul.f32.gmra.mxu0 %v190
  %v192 = vpop.f32.mrf.mxu0
  %v193 = vadd.f32 %v131, %v192
  %v194 = vand.u32 %v58, 4294901760
  %195 = vmatmul.f32.gmra.mxu0 %v194
  %v196 = vpop.f32.mrf.mxu0
  %v197 = vadd.f32 %v139, %v196
  %v198 = vand.u32 %v61, 4294901760
  %199 = vmatmul.f32.gmra.mxu0 %v198
  %v200 = vpop.f32.mrf.mxu0
  %v201 = vadd.f32 %v147, %v200
  %202 = vdwg.mxu0
  %203 = vmatpush.msra.mxu0 0.0
  %204 = vmatpush.msra.mxu0 0.0
  %205 = vmatpush.msra.mxu0 0.0
  %206 = vmatpush.msra.mxu0 0.0
  %207 = vmatpush.msra.mxu0 0.0
  %208 = vmatpush.msra.mxu0 0.0
  %209 = vmatpush.msra.mxu0 0.0
  %210 = vmatpush.msra.mxu0 0.0
  %211 = vmatpush.msra.mxu0 0.0
  %212 = vmatpush.msra.mxu0 0.0
  %213 = vmatpush.msra.mxu0 0.0
  %214 = vmatpush.msra.mxu0 0.0
  %215 = vmatpush.msra.mxu0 0.0
  %216 = vmatpush.msra.mxu0 0.0
  %217 = vmatpush.msra.mxu0 0.0
  %v218 = vand.u32 %v65, 4294901760
  %v219 = vsub.f32 %v65, %v218
  %220 = vmatpush.msra.mxu0 %v219
  %v221 = vand.u32 %v40, 4294901760
  %v222 = vsub.f32 %v40, %v221
  %223 = vmatmul.f32.gmra.mxu0 %v222
  %v224 = vpop.f32.mrf.mxu0
  %v225 = vadd.f32 %v173, %v224
  %v226 = vand.u32 %v43, 4294901760
  %v227 = vsub.f32 %v43, %v226
  %228 = vmatmul.f32.gmra.mxu0 %v227
  %v229 = vpop.f32.mrf.mxu0
  %v230 = vadd.f32 %v177, %v229
  %v231 = vand.u32 %v46, 4294901760
  %v232 = vsub.f32 %v46, %v231
  %233 = vmatmul.f32.gmra.mxu0 %v232
  %v234 = vpop.f32.mrf.mxu0
  %v235 = vadd.f32 %v181, %v234
  %v236 = vand.u32 %v49, 4294901760
  %v237 = vsub.f32 %v49, %v236
  %238 = vmatmul.f32.gmra.mxu0 %v237
  %v239 = vpop.f32.mrf.mxu0
  %v240 = vadd.f32 %v185, %v239
  %v241 = vand.u32 %v52, 4294901760
  %v242 = vsub.f32 %v52, %v241
  %243 = vmatmul.f32.gmra.mxu0 %v242
  %v244 = vpop.f32.mrf.mxu0
  %v245 = vadd.f32 %v189, %v244
  %v246 = vand.u32 %v55, 4294901760
  %v247 = vsub.f32 %v55, %v246
  %248 = vmatmul.f32.gmra.mxu0 %v247
  %v249 = vpop.f32.mrf.mxu0
  %v250 = vadd.f32 %v193, %v249
  %v251 = vand.u32 %v58, 4294901760
  %v252 = vsub.f32 %v58, %v251
  %253 = vmatmul.f32.gmra.mxu0 %v252
  %v254 = vpop.f32.mrf.mxu0
  %v255 = vadd.f32 %v197, %v254
  %v256 = vand.u32 %v61, 4294901760
  %v257 = vsub.f32 %v61, %v256
  %258 = vmatmul.f32.gmra.mxu0 %v257
  %v259 = vpop.f32.mrf.mxu0
  %v260 = vadd.f32 %v201, %v259
  %261 = vdwg.mxu0
  %262 = vmatpush.msra.mxu0 0.0
  %263 = vmatpush.msra.mxu0 0.0
  %264 = vmatpush.msra.mxu0 0.0
  %265 = vmatpush.msra.mxu0 0.0
  %266 = vmatpush.msra.mxu0 0.0
  %267 = vmatpush.msra.mxu0 0.0
  %268 = vmatpush.msra.mxu0 0.0
  %269 = vmatpush.msra.mxu0 0.0
  %270 = vmatpush.msra.mxu0 0.0
  %271 = vmatpush.msra.mxu0 0.0
  %272 = vmatpush.msra.mxu0 0.0
  %273 = vmatpush.msra.mxu0 0.0
  %274 = vmatpush.msra.mxu0 0.0
  %275 = vmatpush.msra.mxu0 0.0
  %276 = vmatpush.msra.mxu0 0.0
  %v277 = vand.u32 %v65, 4294901760
  %278 = vmatpush.msra.mxu0 %v277
  %v279 = vand.u32 %v40, 4294901760
  %v280 = vsub.f32 %v40, %v279
  %v281 = vand.u32 %v280, 4294901760
  %282 = vmatmul.f32.gmra.mxu0 %v281
  %v283 = vpop.f32.mrf.mxu0
  %v284 = vadd.f32 %v225, %v283
  %v285 = vand.u32 %v43, 4294901760
  %v286 = vsub.f32 %v43, %v285
  %v287 = vand.u32 %v286, 4294901760
  %288 = vmatmul.f32.gmra.mxu0 %v287
  %v289 = vpop.f32.mrf.mxu0
  %v290 = vadd.f32 %v230, %v289
  %v291 = vand.u32 %v46, 4294901760
  %v292 = vsub.f32 %v46, %v291
  %v293 = vand.u32 %v292, 4294901760
  %294 = vmatmul.f32.gmra.mxu0 %v293
  %v295 = vpop.f32.mrf.mxu0
  %v296 = vadd.f32 %v235, %v295
  %v297 = vand.u32 %v49, 4294901760
  %v298 = vsub.f32 %v49, %v297
  %v299 = vand.u32 %v298, 4294901760
  %300 = vmatmul.f32.gmra.mxu0 %v299
  %v301 = vpop.f32.mrf.mxu0
  %v302 = vadd.f32 %v240, %v301
  %v303 = vand.u32 %v52, 4294901760
  %v304 = vsub.f32 %v52, %v303
  %v305 = vand.u32 %v304, 4294901760
  %306 = vmatmul.f32.gmra.mxu0 %v305
  %v307 = vpop.f32.mrf.mxu0
  %v308 = vadd.f32 %v245, %v307
  %v309 = vand.u32 %v55, 4294901760
  %v310 = vsub.f32 %v55, %v309
  %v311 = vand.u32 %v310, 4294901760
  %312 = vmatmul.f32.gmra.mxu0 %v311
  %v313 = vpop.f32.mrf.mxu0
  %v314 = vadd.f32 %v250, %v313
  %v315 = vand.u32 %v58, 4294901760
  %v316 = vsub.f32 %v58, %v315
  %v317 = vand.u32 %v316, 4294901760
  %318 = vmatmul.f32.gmra.mxu0 %v317
  %v319 = vpop.f32.mrf.mxu0
  %v320 = vadd.f32 %v255, %v319
  %v321 = vand.u32 %v61, 4294901760
  %v322 = vsub.f32 %v61, %v321
  %v323 = vand.u32 %v322, 4294901760
  %324 = vmatmul.f32.gmra.mxu0 %v323
  %v325 = vpop.f32.mrf.mxu0
  %v326 = vadd.f32 %v260, %v325
  %327 = vdwg.mxu0
  %328 = vmatpush.msra.mxu0 0.0
  %329 = vmatpush.msra.mxu0 0.0
  %330 = vmatpush.msra.mxu0 0.0
  %331 = vmatpush.msra.mxu0 0.0
  %332 = vmatpush.msra.mxu0 0.0
  %333 = vmatpush.msra.mxu0 0.0
  %334 = vmatpush.msra.mxu0 0.0
  %335 = vmatpush.msra.mxu0 0.0
  %336 = vmatpush.msra.mxu0 0.0
  %337 = vmatpush.msra.mxu0 0.0
  %338 = vmatpush.msra.mxu0 0.0
  %339 = vmatpush.msra.mxu0 0.0
  %340 = vmatpush.msra.mxu0 0.0
  %341 = vmatpush.msra.mxu0 0.0
  %342 = vmatpush.msra.mxu0 0.0
  %v343 = vand.u32 %v65, 4294901760
  %v344 = vsub.f32 %v65, %v343
  %v345 = vand.u32 %v344, 4294901760
  %346 = vmatpush.msra.mxu0 %v345
  %v347 = vand.u32 %v40, 4294901760
  %348 = vmatmul.f32.gmra.mxu0 %v347
  %v349 = vpop.f32.mrf.mxu0
  %v350 = vadd.f32 %v284, %v349
  %v351 = vand.u32 %v43, 4294901760
  %352 = vmatmul.f32.gmra.mxu0 %v351
  %v353 = vpop.f32.mrf.mxu0
  %v354 = vadd.f32 %v290, %v353
  %v355 = vand.u32 %v46, 4294901760
  %356 = vmatmul.f32.gmra.mxu0 %v355
  %v357 = vpop.f32.mrf.mxu0
  %v358 = vadd.f32 %v296, %v357
  %v359 = vand.u32 %v49, 4294901760
  %360 = vmatmul.f32.gmra.mxu0 %v359
  %v361 = vpop.f32.mrf.mxu0
  %v362 = vadd.f32 %v302, %v361
  %v363 = vand.u32 %v52, 4294901760
  %364 = vmatmul.f32.gmra.mxu0 %v363
  %v365 = vpop.f32.mrf.mxu0
  %v366 = vadd.f32 %v308, %v365
  %v367 = vand.u32 %v55, 4294901760
  %368 = vmatmul.f32.gmra.mxu0 %v367
  %v369 = vpop.f32.mrf.mxu0
  %v370 = vadd.f32 %v314, %v369
  %v371 = vand.u32 %v58, 4294901760
  %372 = vmatmul.f32.gmra.mxu0 %v371
  %v373 = vpop.f32.mrf.mxu0
  %v374 = vadd.f32 %v320, %v373
  %v375 = vand.u32 %v61, 4294901760
  %376 = vmatmul.f32.gmra.mxu0 %v375
  %v377 = vpop.f32.mrf.mxu0
  %v378 = vadd.f32 %v326, %v377
  %379 = vdwg.mxu0
  %380 = vmatpush.msra.mxu0 0.0
  %381 = vmatpush.msra.mxu0 0.0
  %382 = vmatpush.msra.mxu0 0.0
  %383 = vmatpush.msra.mxu0 0.0
  %384 = vmatpush.msra.mxu0 0.0
  %385 = vmatpush.msra.mxu0 0.0
  %386 = vmatpush.msra.mxu0 0.0
  %387 = vmatpush.msra.mxu0 0.0
  %388 = vmatpush.msra.mxu0 0.0
  %389 = vmatpush.msra.mxu0 0.0
  %390 = vmatpush.msra.mxu0 0.0
  %391 = vmatpush.msra.mxu0 0.0
  %392 = vmatpush.msra.mxu0 0.0
  %393 = vmatpush.msra.mxu0 0.0
  %394 = vmatpush.msra.mxu0 0.0
  %v395 = vand.u32 %v65, 4294901760
  %396 = vmatpush.msra.mxu0 %v395
  %v397 = vand.u32 %v40, 4294901760
  %398 = vmatmul.f32.gmra.mxu0 %v397
  %v399 = vpop.f32.mrf.mxu0
  %v400 = vadd.f32 %v350, %v399
  %v401 = vand.u32 %v43, 4294901760
  %402 = vmatmul.f32.gmra.mxu0 %v401
  %v403 = vpop.f32.mrf.mxu0
  %v404 = vadd.f32 %v354, %v403
  %v405 = vand.u32 %v46, 4294901760
  %406 = vmatmul.f32.gmra.mxu0 %v405
  %v407 = vpop.f32.mrf.mxu0
  %v408 = vadd.f32 %v358, %v407
  %v409 = vand.u32 %v49, 4294901760
  %410 = vmatmul.f32.gmra.mxu0 %v409
  %v411 = vpop.f32.mrf.mxu0
  %v412 = vadd.f32 %v362, %v411
  %v413 = vand.u32 %v52, 4294901760
  %414 = vmatmul.f32.gmra.mxu0 %v413
  %v415 = vpop.f32.mrf.mxu0
  %v416 = vadd.f32 %v366, %v415
  %v417 = vand.u32 %v55, 4294901760
  %418 = vmatmul.f32.gmra.mxu0 %v417
  %v419 = vpop.f32.mrf.mxu0
  %v420 = vadd.f32 %v370, %v419
  %v421 = vand.u32 %v58, 4294901760
  %422 = vmatmul.f32.gmra.mxu0 %v421
  %v423 = vpop.f32.mrf.mxu0
  %v424 = vadd.f32 %v374, %v423
  %v425 = vand.u32 %v61, 4294901760
  %426 = vmatmul.f32.gmra.mxu0 %v425
  %v427 = vpop.f32.mrf.mxu0
  %v428 = vadd.f32 %v378, %v427
  %429 = vdwg.mxu0
  %430 = vst [vmem:[#allocation2] sm:$0xff] %v400
  %431 = vst [vmem:[#allocation2 + $0x8] sm:$0xff] %v404
  %432 = vst [vmem:[#allocation2 + $0x10] sm:$0xff] %v408
  %433 = vst [vmem:[#allocation2 + $0x18] sm:$0xff] %v412
  %434 = vst [vmem:[#allocation2 + $0x20] sm:$0xff] %v416
  %435 = vst [vmem:[#allocation2 + $0x28] sm:$0xff] %v420
  %436 = vst [vmem:[#allocation2 + $0x30] sm:$0xff] %v424
  %437 = vst [vmem:[#allocation2 + $0x38] sm:$0xff] %v428
  %v438 = vld [vmem:[%s2] sm:$0xff]
  %v439 = vld [vmem:[%s2 + $0x8] sm:$0xff]
  %v440 = vld [vmem:[%s2 + $0x10] sm:$0xff]
  %v441 = vld [vmem:[%s2 + $0x18] sm:$0xff]
  %v442 = vld [vmem:[#allocation2] sm:$0xff]
  %vm443 = vcmask 261120
  %v445 = vsel %vm443, 0.0, 0
  %447 = vmatpush.msra.mxu0 0.0
  %448 = vmatpush.msra.mxu0 0.0
  %449 = vmatpush.msra.mxu0 0.0
  %450 = vmatpush.msra.mxu0 0.0
  %451 = vmatpush.msra.mxu0 0.0
  %452 = vmatpush.msra.mxu0 0.0
  %453 = vmatpush.msra.mxu0 0.0
  %454 = vmatpush.msra.mxu0 0.0
  %455 = vmatpush.msra.mxu0 0.0
  %456 = vmatpush.msra.mxu0 0.0
  %457 = vmatpush.msra.mxu0 0.0
  %458 = vmatpush.msra.mxu0 0.0
  %v459 = vand.u32 %v441, 4294901760
  %460 = vmatpush.msra.mxu0 %v459
  %v461 = vand.u32 %v440, 4294901760
  %462 = vmatpush.msra.mxu0 %v461
  %v463 = vand.u32 %v439, 4294901760
  %464 = vmatpush.msra.mxu0 %v463
  %v465 = vand.u32 %v438, 4294901760
  %466 = vmatpush.msra.mxu0 %v465
  %v467 = vand.u32 %v445, 4294901760
  %v468 = vsub.f32 %v445, %v467
  %v469 = vand.u32 %v468, 4294901760
  %v470 = vsub.f32 %v468, %v469
  %v471 = vand.u32 %v470, 4294901760
  %472 = vmatmul.f32.gmra.mxu0 %v471
  %v473 = vpop.f32.mrf.mxu0
  %v474 = vadd.f32 0.0, %v473
  %475 = vdwg.mxu0
  %476 = vmatpush.msra.mxu0 0.0
  %477 = vmatpush.msra.mxu0 0.0
  %478 = vmatpush.msra.mxu0 0.0
  %479 = vmatpush.msra.mxu0 0.0
  %480 = vmatpush.msra.mxu0 0.0
  %481 = vmatpush.msra.mxu0 0.0
  %482 = vmatpush.msra.mxu0 0.0
  %483 = vmatpush.msra.mxu0 0.0
  %484 = vmatpush.msra.mxu0 0.0
  %485 = vmatpush.msra.mxu0 0.0
  %486 = vmatpush.msra.mxu0 0.0
  %487 = vmatpush.msra.mxu0 0.0
  %v488 = vand.u32 %v441, 4294901760
  %v489 = vsub.f32 %v441, %v488
  %v490 = vand.u32 %v489, 4294901760
  %v491 = vsub.f32 %v489, %v490
  %v492 = vand.u32 %v491, 4294901760
  %493 = vmatpush.msra.mxu0 %v492
  %v494 = vand.u32 %v440, 4294901760
  %v495 = vsub.f32 %v440, %v494
  %v496 = vand.u32 %v495, 4294901760
  %v497 = vsub.f32 %v495, %v496
  %v498 = vand.u32 %v497, 4294901760
  %499 = vmatpush.msra.mxu0 %v498
  %v500 = vand.u32 %v439, 4294901760
  %v501 = vsub.f32 %v439, %v500
  %v502 = vand.u32 %v501, 4294901760
  %v503 = vsub.f32 %v501, %v502
  %v504 = vand.u32 %v503, 4294901760
  %505 = vmatpush.msra.mxu0 %v504
  %v506 = vand.u32 %v438, 4294901760
  %v507 = vsub.f32 %v438, %v506
  %v508 = vand.u32 %v507, 4294901760
  %v509 = vsub.f32 %v507, %v508
  %v510 = vand.u32 %v509, 4294901760
  %511 = vmatpush.msra.mxu0 %v510
  %v512 = vand.u32 %v445, 4294901760
  %513 = vmatmul.f32.gmra.mxu0 %v512
  %v514 = vpop.f32.mrf.mxu0
  %v515 = vadd.f32 %v474, %v514
  %516 = vdwg.mxu0
  %517 = vmatpush.msra.mxu0 0.0
  %518 = vmatpush.msra.mxu0 0.0
  %519 = vmatpush.msra.mxu0 0.0
  %520 = vmatpush.msra.mxu0 0.0
  %521 = vmatpush.msra.mxu0 0.0
  %522 = vmatpush.msra.mxu0 0.0
  %523 = vmatpush.msra.mxu0 0.0
  %524 = vmatpush.msra.mxu0 0.0
  %525 = vmatpush.msra.mxu0 0.0
  %526 = vmatpush.msra.mxu0 0.0
  %527 = vmatpush.msra.mxu0 0.0
  %528 = vmatpush.msra.mxu0 0.0
  %v529 = vand.u32 %v441, 4294901760
  %v530 = vsub.f32 %v441, %v529
  %531 = vmatpush.msra.mxu0 %v530
  %v532 = vand.u32 %v440, 4294901760
  %v533 = vsub.f32 %v440, %v532
  %534 = vmatpush.msra.mxu0 %v533
  %v535 = vand.u32 %v439, 4294901760
  %v536 = vsub.f32 %v439, %v535
  %537 = vmatpush.msra.mxu0 %v536
  %v538 = vand.u32 %v438, 4294901760
  %v539 = vsub.f32 %v438, %v538
  %540 = vmatpush.msra.mxu0 %v539
  %v541 = vand.u32 %v445, 4294901760
  %v542 = vsub.f32 %v445, %v541
  %543 = vmatmul.f32.gmra.mxu0 %v542
  %v544 = vpop.f32.mrf.mxu0
  %v545 = vadd.f32 %v515, %v544
  %546 = vdwg.mxu0
  %547 = vmatpush.msra.mxu0 0.0
  %548 = vmatpush.msra.mxu0 0.0
  %549 = vmatpush.msra.mxu0 0.0
  %550 = vmatpush.msra.mxu0 0.0
  %551 = vmatpush.msra.mxu0 0.0
  %552 = vmatpush.msra.mxu0 0.0
  %553 = vmatpush.msra.mxu0 0.0
  %554 = vmatpush.msra.mxu0 0.0
  %555 = vmatpush.msra.mxu0 0.0
  %556 = vmatpush.msra.mxu0 0.0
  %557 = vmatpush.msra.mxu0 0.0
  %558 = vmatpush.msra.mxu0 0.0
  %v559 = vand.u32 %v441, 4294901760
  %560 = vmatpush.msra.mxu0 %v559
  %v561 = vand.u32 %v440, 4294901760
  %562 = vmatpush.msra.mxu0 %v561
  %v563 = vand.u32 %v439, 4294901760
  %564 = vmatpush.msra.mxu0 %v563
  %v565 = vand.u32 %v438, 4294901760
  %566 = vmatpush.msra.mxu0 %v565
  %v567 = vand.u32 %v445, 4294901760
  %v568 = vsub.f32 %v445, %v567
  %v569 = vand.u32 %v568, 4294901760
  %570 = vmatmul.f32.gmra.mxu0 %v569
  %v571 = vpop.f32.mrf.mxu0
  %v572 = vadd.f32 %v545, %v571
  %573 = vdwg.mxu0
  %574 = vmatpush.msra.mxu0 0.0
  %575 = vmatpush.msra.mxu0 0.0
  %576 = vmatpush.msra.mxu0 0.0
  %577 = vmatpush.msra.mxu0 0.0
  %578 = vmatpush.msra.mxu0 0.0
  %579 = vmatpush.msra.mxu0 0.0
  %580 = vmatpush.msra.mxu0 0.0
  %581 = vmatpush.msra.mxu0 0.0
  %582 = vmatpush.msra.mxu0 0.0
  %583 = vmatpush.msra.mxu0 0.0
  %584 = vmatpush.msra.mxu0 0.0
  %585 = vmatpush.msra.mxu0 0.0
  %v586 = vand.u32 %v441, 4294901760
  %v587 = vsub.f32 %v441, %v586
  %v588 = vand.u32 %v587, 4294901760
  %589 = vmatpush.msra.mxu0 %v588
  %v590 = vand.u32 %v440, 4294901760
  %v591 = vsub.f32 %v440, %v590
  %v592 = vand.u32 %v591, 4294901760
  %593 = vmatpush.msra.mxu0 %v592
  %v594 = vand.u32 %v439, 4294901760
  %v595 = vsub.f32 %v439, %v594
  %v596 = vand.u32 %v595, 4294901760
  %597 = vmatpush.msra.mxu0 %v596
  %v598 = vand.u32 %v438, 4294901760
  %v599 = vsub.f32 %v438, %v598
  %v600 = vand.u32 %v599, 4294901760
  %601 = vmatpush.msra.mxu0 %v600
  %v602 = vand.u32 %v445, 4294901760
  %603 = vmatmul.f32.gmra.mxu0 %v602
  %v604 = vpop.f32.mrf.mxu0
  %v605 = vadd.f32 %v572, %v604
  %606 = vdwg.mxu0
  %607 = vmatpush.msra.mxu0 0.0
  %608 = vmatpush.msra.mxu0 0.0
  %609 = vmatpush.msra.mxu0 0.0
  %610 = vmatpush.msra.mxu0 0.0
  %611 = vmatpush.msra.mxu0 0.0
  %612 = vmatpush.msra.mxu0 0.0
  %613 = vmatpush.msra.mxu0 0.0
  %614 = vmatpush.msra.mxu0 0.0
  %615 = vmatpush.msra.mxu0 0.0
  %616 = vmatpush.msra.mxu0 0.0
  %617 = vmatpush.msra.mxu0 0.0
  %618 = vmatpush.msra.mxu0 0.0
  %v619 = vand.u32 %v441, 4294901760
  %620 = vmatpush.msra.mxu0 %v619
  %v621 = vand.u32 %v440, 4294901760
  %622 = vmatpush.msra.mxu0 %v621
  %v623 = vand.u32 %v439, 4294901760
  %624 = vmatpush.msra.mxu0 %v623
  %v625 = vand.u32 %v438, 4294901760
  %626 = vmatpush.msra.mxu0 %v625
  %v627 = vand.u32 %v445, 4294901760
  %628 = vmatmul.f32.gmra.mxu0 %v627
  %v629 = vpop.f32.mrf.mxu0
  %v630 = vadd.f32 %v605, %v629
  %631 = vdwg.mxu0
  %v632 = vadd.f32 %v442, %v630
  %v633 = vxor.u32 %v632, 2147483648
  %v634 = vmul.f32 %v633, 1.442695
  %v635 = vpow.pop %v634
  %v636 = vadd.f32 %v635, 1.0
  %v637 = vrcp.pop %v636
  %v638 = vmul.f32 %v636, %v637
  %v639 = vsub.f32 1.0, %v638
  %v640 = vmul.f32 %v637, %v639
  %v641 = vadd.f32 %v637, %v640
  %vm642 = vweird.f32 %v636
  %vm643 = vweird.f32 %v637
  %vm644 = vmor %vm642, %vm643
  %v645 = vsel %vm644, %v637, %v641
  %v646 = vand.u32 2147483647, %v636
  %vm647 = vcmp.eq.f32.partialorder %v646, 8.507059e+37
  %v648 = vand.u32 %v636, 2147483648
  %v649 = vor.u32 1.1754944e-38, %v648
  %v650 = vsel %vm647, %v649, %v645
  %v651 = vmul.f32 1.0, %v650
  %v652 = vmul.f32 %v651, 2.0
  %v653 = vsub.f32 %v652, 1.0
  %v654 = vmul.f32 %v651, 0.0
  %656 = vrot.lane.b32.xlu0 %v653, 64
  %v657 = vpop.permute.xlu0 %656
  %v659 = vmul.f32 %v651, %v657
  %661 = vrot.lane.b32.xlu0 %v659, 32
  %v662 = vpop.permute.xlu0 %661
  %v664 = vadd.f32 %v654, %v662
  %v665 = vtanh.pop %v664
  %667 = vrot.lane.b32.xlu0 %v665, 64
  %v668 = vpop.permute.xlu0 %667
  %v670 = vmul.f32 %v651, %v668
  %v671 = vld [vmem:[#allocation2 + $0x8] sm:$0xff]
  %673 = vrot.lane.b32.xlu0 %v670, 32
  %v674 = vpop.permute.xlu0 %673
  %v675 = vsel %vm443, %v674, 0
  %677 = vmatpush.msra.mxu0 0.0
  %678 = vmatpush.msra.mxu0 0.0
  %679 = vmatpush.msra.mxu0 0.0
  %680 = vmatpush.msra.mxu0 0.0
  %681 = vmatpush.msra.mxu0 0.0
  %682 = vmatpush.msra.mxu0 0.0
  %683 = vmatpush.msra.mxu0 0.0
  %684 = vmatpush.msra.mxu0 0.0
  %685 = vmatpush.msra.mxu0 0.0
  %686 = vmatpush.msra.mxu0 0.0
  %687 = vmatpush.msra.mxu0 0.0
  %688 = vmatpush.msra.mxu0 0.0
  %v689 = vand.u32 %v441, 4294901760
  %690 = vmatpush.msra.mxu0 %v689
  %v691 = vand.u32 %v440, 4294901760
  %692 = vmatpush.msra.mxu0 %v691
  %v693 = vand.u32 %v439, 4294901760
  %694 = vmatpush.msra.mxu0 %v693
  %v695 = vand.u32 %v438, 4294901760
  %696 = vmatpush.msra.mxu0 %v695
  %v697 = vand.u32 %v675, 4294901760
  %v698 = vsub.f32 %v675, %v697
  %v699 = vand.u32 %v698, 4294901760
  %v700 = vsub.f32 %v698, %v699
  %v701 = vand.u32 %v700, 4294901760
  %702 = vmatmul.f32.gmra.mxu0 %v701
  %v703 = vpop.f32.mrf.mxu0
  %v704 = vadd.f32 0.0, %v703
  %705 = vdwg.mxu0
  %706 = vmatpush.msra.mxu0 0.0
  %707 = vmatpush.msra.mxu0 0.0
  %708 = vmatpush.msra.mxu0 0.0
  %709 = vmatpush.msra.mxu0 0.0
  %710 = vmatpush.msra.mxu0 0.0
  %711 = vmatpush.msra.mxu0 0.0
  %712 = vmatpush.msra.mxu0 0.0
  %713 = vmatpush.msra.mxu0 0.0
  %714 = vmatpush.msra.mxu0 0.0
  %715 = vmatpush.msra.mxu0 0.0
  %716 = vmatpush.msra.mxu0 0.0
  %717 = vmatpush.msra.mxu0 0.0
  %v718 = vand.u32 %v441, 4294901760
  %v719 = vsub.f32 %v441, %v718
  %v720 = vand.u32 %v719, 4294901760
  %v721 = vsub.f32 %v719, %v720
  %v722 = vand.u32 %v721, 4294901760
  %723 = vmatpush.msra.mxu0 %v722
  %v724 = vand.u32 %v440, 4294901760
  %v725 = vsub.f32 %v440, %v724
  %v726 = vand.u32 %v725, 4294901760
  %v727 = vsub.f32 %v725, %v726
  %v728 = vand.u32 %v727, 4294901760
  %729 = vmatpush.msra.mxu0 %v728
  %v730 = vand.u32 %v439, 4294901760
  %v731 = vsub.f32 %v439, %v730
  %v732 = vand.u32 %v731, 4294901760
  %v733 = vsub.f32 %v731, %v732
  %v734 = vand.u32 %v733, 4294901760
  %735 = vmatpush.msra.mxu0 %v734
  %v736 = vand.u32 %v438, 4294901760
  %v737 = vsub.f32 %v438, %v736
  %v738 = vand.u32 %v737, 4294901760
  %v739 = vsub.f32 %v737, %v738
  %v740 = vand.u32 %v739, 4294901760
  %741 = vmatpush.msra.mxu0 %v740
  %v742 = vand.u32 %v675, 4294901760
  %743 = vmatmul.f32.gmra.mxu0 %v742
  %v744 = vpop.f32.mrf.mxu0
  %v745 = vadd.f32 %v704, %v744
  %746 = vdwg.mxu0
  %747 = vmatpush.msra.mxu0 0.0
  %748 = vmatpush.msra.mxu0 0.0
  %749 = vmatpush.msra.mxu0 0.0
  %750 = vmatpush.msra.mxu0 0.0
  %751 = vmatpush.msra.mxu0 0.0
  %752 = vmatpush.msra.mxu0 0.0
  %753 = vmatpush.msra.mxu0 0.0
  %754 = vmatpush.msra.mxu0 0.0
  %755 = vmatpush.msra.mxu0 0.0
  %756 = vmatpush.msra.mxu0 0.0
  %757 = vmatpush.msra.mxu0 0.0
  %758 = vmatpush.msra.mxu0 0.0
  %v759 = vand.u32 %v441, 4294901760
  %v760 = vsub.f32 %v441, %v759
  %761 = vmatpush.msra.mxu0 %v760
  %v762 = vand.u32 %v440, 4294901760
  %v763 = vsub.f32 %v440, %v762
  %764 = vmatpush.msra.mxu0 %v763
  %v765 = vand.u32 %v439, 4294901760
  %v766 = vsub.f32 %v439, %v765
  %767 = vmatpush.msra.mxu0 %v766
  %v768 = vand.u32 %v438, 4294901760
  %v769 = vsub.f32 %v438, %v768
  %770 = vmatpush.msra.mxu0 %v769
  %v771 = vand.u32 %v675, 4294901760
  %v772 = vsub.f32 %v675, %v771
  %773 = vmatmul.f32.gmra.mxu0 %v772
  %v774 = vpop.f32.mrf.mxu0
  %v775 = vadd.f32 %v745, %v774
  %776 = vdwg.mxu0
  %777 = vmatpush.msra.mxu0 0.0
  %778 = vmatpush.msra.mxu0 0.0
  %779 = vmatpush.msra.mxu0 0.0
  %780 = vmatpush.msra.mxu0 0.0
  %781 = vmatpush.msra.mxu0 0.0
  %782 = vmatpush.msra.mxu0 0.0
  %783 = vmatpush.msra.mxu0 0.0
  %784 = vmatpush.msra.mxu0 0.0
  %785 = vmatpush.msra.mxu0 0.0
  %786 = vmatpush.msra.mxu0 0.0
  %787 = vmatpush.msra.mxu0 0.0
  %788 = vmatpush.msra.mxu0 0.0
  %v789 = vand.u32 %v441, 4294901760
  %790 = vmatpush.msra.mxu0 %v789
  %v791 = vand.u32 %v440, 4294901760
  %792 = vmatpush.msra.mxu0 %v791
  %v793 = vand.u32 %v439, 4294901760
  %794 = vmatpush.msra.mxu0 %v793
  %v795 = vand.u32 %v438, 4294901760
  %796 = vmatpush.msra.mxu0 %v795
  %v797 = vand.u32 %v675, 4294901760
  %v798 = vsub.f32 %v675, %v797
  %v799 = vand.u32 %v798, 4294901760
  %800 = vmatmul.f32.gmra.mxu0 %v799
  %v801 = vpop.f32.mrf.mxu0
  %v802 = vadd.f32 %v775, %v801
  %803 = vdwg.mxu0
  %804 = vmatpush.msra.mxu0 0.0
  %805 = vmatpush.msra.mxu0 0.0
  %806 = vmatpush.msra.mxu0 0.0
  %807 = vmatpush.msra.mxu0 0.0
  %808 = vmatpush.msra.mxu0 0.0
  %809 = vmatpush.msra.mxu0 0.0
  %810 = vmatpush.msra.mxu0 0.0
  %811 = vmatpush.msra.mxu0 0.0
  %812 = vmatpush.msra.mxu0 0.0
  %813 = vmatpush.msra.mxu0 0.0
  %814 = vmatpush.msra.mxu0 0.0
  %815 = vmatpush.msra.mxu0 0.0
  %v816 = vand.u32 %v441, 4294901760
  %v817 = vsub.f32 %v441, %v816
  %v818 = vand.u32 %v817, 4294901760
  %819 = vmatpush.msra.mxu0 %v818
  %v820 = vand.u32 %v440, 4294901760
  %v821 = vsub.f32 %v440, %v820
  %v822 = vand.u32 %v821, 4294901760
  %823 = vmatpush.msra.mxu0 %v822
  %v824 = vand.u32 %v439, 4294901760
  %v825 = vsub.f32 %v439, %v824
  %v826 = vand.u32 %v825, 4294901760
  %827 = vmatpush.msra.mxu0 %v826
  %v828 = vand.u32 %v438, 4294901760
  %v829 = vsub.f32 %v438, %v828
  %v830 = vand.u32 %v829, 4294901760
  %831 = vmatpush.msra.mxu0 %v830
  %v832 = vand.u32 %v675, 4294901760
  %833 = vmatmul.f32.gmra.mxu0 %v832
  %v834 = vpop.f32.mrf.mxu0
  %v835 = vadd.f32 %v802, %v834
  %836 = vdwg.mxu0
  %837 = vmatpush.msra.mxu0 0.0
  %838 = vmatpush.msra.mxu0 0.0
  %839 = vmatpush.msra.mxu0 0.0
  %840 = vmatpush.msra.mxu0 0.0
  %841 = vmatpush.msra.mxu0 0.0
  %842 = vmatpush.msra.mxu0 0.0
  %843 = vmatpush.msra.mxu0 0.0
  %844 = vmatpush.msra.mxu0 0.0
  %845 = vmatpush.msra.mxu0 0.0
  %846 = vmatpush.msra.mxu0 0.0
  %847 = vmatpush.msra.mxu0 0.0
  %848 = vmatpush.msra.mxu0 0.0
  %v849 = vand.u32 %v441, 4294901760
  %850 = vmatpush.msra.mxu0 %v849
  %v851 = vand.u32 %v440, 4294901760
  %852 = vmatpush.msra.mxu0 %v851
  %v853 = vand.u32 %v439, 4294901760
  %854 = vmatpush.msra.mxu0 %v853
  %v855 = vand.u32 %v438, 4294901760
  %856 = vmatpush.msra.mxu0 %v855
  %v857 = vand.u32 %v675, 4294901760
  %858 = vmatmul.f32.gmra.mxu0 %v857
  %v859 = vpop.f32.mrf.mxu0
  %v860 = vadd.f32 %v835, %v859
  %861 = vdwg.mxu0
  %v862 = vadd.f32 %v671, %v860
  %v863 = vxor.u32 %v862, 2147483648
  %v864 = vmul.f32 %v863, 1.442695
  %v865 = vpow.pop %v864
  %v866 = vadd.f32 %v865, 1.0
  %v867 = vrcp.pop %v866
  %v868 = vmul.f32 %v866, %v867
  %v869 = vsub.f32 1.0, %v868
  %v870 = vmul.f32 %v867, %v869
  %v871 = vadd.f32 %v867, %v870
  %vm872 = vweird.f32 %v866
  %vm873 = vweird.f32 %v867
  %vm874 = vmor %vm872, %vm873
  %v875 = vsel %vm874, %v867, %v871
  %v876 = vand.u32 2147483647, %v866
  %vm877 = vcmp.eq.f32.partialorder %v876, 8.507059e+37
  %v878 = vand.u32 %v866, 2147483648
  %v879 = vor.u32 1.1754944e-38, %v878
  %v880 = vsel %vm877, %v879, %v875
  %v881 = vmul.f32 1.0, %v880
  %v882 = vmul.f32 %v881, 2.0
  %v883 = vsub.f32 %v882, 1.0
  %v884 = vmul.f32 %v881, %v664
  %886 = vrot.lane.b32.xlu0 %v883, 64
  %v887 = vpop.permute.xlu0 %886
  %v889 = vmul.f32 %v881, %v887
  %891 = vrot.lane.b32.xlu0 %v889, 32
  %v892 = vpop.permute.xlu0 %891
  %v894 = vadd.f32 %v884, %v892
  %v895 = vtanh.pop %v894
  %897 = vrot.lane.b32.xlu0 %v895, 64
  %v898 = vpop.permute.xlu0 %897
  %v900 = vmul.f32 %v881, %v898
  %v901 = vld [vmem:[#allocation2 + $0x10] sm:$0xff]
  %903 = vrot.lane.b32.xlu0 %v900, 32
  %v904 = vpop.permute.xlu0 %903
  %v905 = vsel %vm443, %v904, 0
  %907 = vmatpush.msra.mxu0 0.0
  %908 = vmatpush.msra.mxu0 0.0
  %909 = vmatpush.msra.mxu0 0.0
  %910 = vmatpush.msra.mxu0 0.0
  %911 = vmatpush.msra.mxu0 0.0
  %912 = vmatpush.msra.mxu0 0.0
  %913 = vmatpush.msra.mxu0 0.0
  %914 = vmatpush.msra.mxu0 0.0
  %915 = vmatpush.msra.mxu0 0.0
  %916 = vmatpush.msra.mxu0 0.0
  %917 = vmatpush.msra.mxu0 0.0
  %918 = vmatpush.msra.mxu0 0.0
  %v919 = vand.u32 %v441, 4294901760
  %920 = vmatpush.msra.mxu0 %v919
  %v921 = vand.u32 %v440, 4294901760
  %922 = vmatpush.msra.mxu0 %v921
  %v923 = vand.u32 %v439, 4294901760
  %924 = vmatpush.msra.mxu0 %v923
  %v925 = vand.u32 %v438, 4294901760
  %926 = vmatpush.msra.mxu0 %v925
  %v927 = vand.u32 %v905, 4294901760
  %v928 = vsub.f32 %v905, %v927
  %v929 = vand.u32 %v928, 4294901760
  %v930 = vsub.f32 %v928, %v929
  %v931 = vand.u32 %v930, 4294901760
  %932 = vmatmul.f32.gmra.mxu0 %v931
  %v933 = vpop.f32.mrf.mxu0
  %v934 = vadd.f32 0.0, %v933
  %935 = vdwg.mxu0
  %936 = vmatpush.msra.mxu0 0.0
  %937 = vmatpush.msra.mxu0 0.0
  %938 = vmatpush.msra.mxu0 0.0
  %939 = vmatpush.msra.mxu0 0.0
  %940 = vmatpush.msra.mxu0 0.0
  %941 = vmatpush.msra.mxu0 0.0
  %942 = vmatpush.msra.mxu0 0.0
  %943 = vmatpush.msra.mxu0 0.0
  %944 = vmatpush.msra.mxu0 0.0
  %945 = vmatpush.msra.mxu0 0.0
  %946 = vmatpush.msra.mxu0 0.0
  %947 = vmatpush.msra.mxu0 0.0
  %v948 = vand.u32 %v441, 4294901760
  %v949 = vsub.f32 %v441, %v948
  %v950 = vand.u32 %v949, 4294901760
  %v951 = vsub.f32 %v949, %v950
  %v952 = vand.u32 %v951, 4294901760
  %953 = vmatpush.msra.mxu0 %v952
  %v954 = vand.u32 %v440, 4294901760
  %v955 = vsub.f32 %v440, %v954
  %v956 = vand.u32 %v955, 4294901760
  %v957 = vsub.f32 %v955, %v956
  %v958 = vand.u32 %v957, 4294901760
  %959 = vmatpush.msra.mxu0 %v958
  %v960 = vand.u32 %v439, 4294901760
  %v961 = vsub.f32 %v439, %v960
  %v962 = vand.u32 %v961, 4294901760
  %v963 = vsub.f32 %v961, %v962
  %v964 = vand.u32 %v963, 4294901760
  %965 = vmatpush.msra.mxu0 %v964
  %v966 = vand.u32 %v438, 4294901760
  %v967 = vsub.f32 %v438, %v966
  %v968 = vand.u32 %v967, 4294901760
  %v969 = vsub.f32 %v967, %v968
  %v970 = vand.u32 %v969, 4294901760
  %971 = vmatpush.msra.mxu0 %v970
  %v972 = vand.u32 %v905, 4294901760
  %973 = vmatmul.f32.gmra.mxu0 %v972
  %v974 = vpop.f32.mrf.mxu0
  %v975 = vadd.f32 %v934, %v974
  %976 = vdwg.mxu0
  %977 = vmatpush.msra.mxu0 0.0
  %978 = vmatpush.msra.mxu0 0.0
  %979 = vmatpush.msra.mxu0 0.0
  %980 = vmatpush.msra.mxu0 0.0
  %981 = vmatpush.msra.mxu0 0.0
  %982 = vmatpush.msra.mxu0 0.0
  %983 = vmatpush.msra.mxu0 0.0
  %984 = vmatpush.msra.mxu0 0.0
  %985 = vmatpush.msra.mxu0 0.0
  %986 = vmatpush.msra.mxu0 0.0
  %987 = vmatpush.msra.mxu0 0.0
  %988 = vmatpush.msra.mxu0 0.0
  %v989 = vand.u32 %v441, 4294901760
  %v990 = vsub.f32 %v441, %v989
  %991 = vmatpush.msra.mxu0 %v990
  %v992 = vand.u32 %v440, 4294901760
  %v993 = vsub.f32 %v440, %v992
  %994 = vmatpush.msra.mxu0 %v993
  %v995 = vand.u32 %v439, 4294901760
  %v996 = vsub.f32 %v439, %v995
  %997 = vmatpush.msra.mxu0 %v996
  %v998 = vand.u32 %v438, 4294901760
  %v999 = vsub.f32 %v438, %v998
  %1000 = vmatpush.msra.mxu0 %v999
  %v1001 = vand.u32 %v905, 4294901760
  %v1002 = vsub.f32 %v905, %v1001
  %1003 = vmatmul.f32.gmra.mxu0 %v1002
  %v1004 = vpop.f32.mrf.mxu0
  %v1005 = vadd.f32 %v975, %v1004
  %1006 = vdwg.mxu0
  %1007 = vmatpush.msra.mxu0 0.0
  %1008 = vmatpush.msra.mxu0 0.0
  %1009 = vmatpush.msra.mxu0 0.0
  %1010 = vmatpush.msra.mxu0 0.0
  %1011 = vmatpush.msra.mxu0 0.0
  %1012 = vmatpush.msra.mxu0 0.0
  %1013 = vmatpush.msra.mxu0 0.0
  %1014 = vmatpush.msra.mxu0 0.0
  %1015 = vmatpush.msra.mxu0 0.0
  %1016 = vmatpush.msra.mxu0 0.0
  %1017 = vmatpush.msra.mxu0 0.0
  %1018 = vmatpush.msra.mxu0 0.0
  %v1019 = vand.u32 %v441, 4294901760
  %1020 = vmatpush.msra.mxu0 %v1019
  %v1021 = vand.u32 %v440, 4294901760
  %1022 = vmatpush.msra.mxu0 %v1021
  %v1023 = vand.u32 %v439, 4294901760
  %1024 = vmatpush.msra.mxu0 %v1023
  %v1025 = vand.u32 %v438, 4294901760
  %1026 = vmatpush.msra.mxu0 %v1025
  %v1027 = vand.u32 %v905, 4294901760
  %v1028 = vsub.f32 %v905, %v1027
  %v1029 = vand.u32 %v1028, 4294901760
  %1030 = vmatmul.f32.gmra.mxu0 %v1029
  %v1031 = vpop.f32.mrf.mxu0
  %v1032 = vadd.f32 %v1005, %v1031
  %1033 = vdwg.mxu0
  %1034 = vmatpush.msra.mxu0 0.0
  %1035 = vmatpush.msra.mxu0 0.0
  %1036 = vmatpush.msra.mxu0 0.0
  %1037 = vmatpush.msra.mxu0 0.0
  %1038 = vmatpush.msra.mxu0 0.0
  %1039 = vmatpush.msra.mxu0 0.0
  %1040 = vmatpush.msra.mxu0 0.0
  %1041 = vmatpush.msra.mxu0 0.0
  %1042 = vmatpush.msra.mxu0 0.0
  %1043 = vmatpush.msra.mxu0 0.0
  %1044 = vmatpush.msra.mxu0 0.0
  %1045 = vmatpush.msra.mxu0 0.0
  %v1046 = vand.u32 %v441, 4294901760
  %v1047 = vsub.f32 %v441, %v1046
  %v1048 = vand.u32 %v1047, 4294901760
  %1049 = vmatpush.msra.mxu0 %v1048
  %v1050 = vand.u32 %v440, 4294901760
  %v1051 = vsub.f32 %v440, %v1050
  %v1052 = vand.u32 %v1051, 4294901760
  %1053 = vmatpush.msra.mxu0 %v1052
  %v1054 = vand.u32 %v439, 4294901760
  %v1055 = vsub.f32 %v439, %v1054
  %v1056 = vand.u32 %v1055, 4294901760
  %1057 = vmatpush.msra.mxu0 %v1056
  %v1058 = vand.u32 %v438, 4294901760
  %v1059 = vsub.f32 %v438, %v1058
  %v1060 = vand.u32 %v1059, 4294901760
  %1061 = vmatpush.msra.mxu0 %v1060
  %v1062 = vand.u32 %v905, 4294901760
  %1063 = vmatmul.f32.gmra.mxu0 %v1062
  %v1064 = vpop.f32.mrf.mxu0
  %v1065 = vadd.f32 %v1032, %v1064
  %1066 = vdwg.mxu0
  %1067 = vmatpush.msra.mxu0 0.0
  %1068 = vmatpush.msra.mxu0 0.0
  %1069 = vmatpush.msra.mxu0 0.0
  %1070 = vmatpush.msra.mxu0 0.0
  %1071 = vmatpush.msra.mxu0 0.0
  %1072 = vmatpush.msra.mxu0 0.0
  %1073 = vmatpush.msra.mxu0 0.0
  %1074 = vmatpush.msra.mxu0 0.0
  %1075 = vmatpush.msra.mxu0 0.0
  %1076 = vmatpush.msra.mxu0 0.0
  %1077 = vmatpush.msra.mxu0 0.0
  %1078 = vmatpush.msra.mxu0 0.0
  %v1079 = vand.u32 %v441, 4294901760
  %1080 = vmatpush.msra.mxu0 %v1079
  %v1081 = vand.u32 %v440, 4294901760
  %1082 = vmatpush.msra.mxu0 %v1081
  %v1083 = vand.u32 %v439, 4294901760
  %1084 = vmatpush.msra.mxu0 %v1083
  %v1085 = vand.u32 %v438, 4294901760
  %1086 = vmatpush.msra.mxu0 %v1085
  %v1087 = vand.u32 %v905, 4294901760
  %1088 = vmatmul.f32.gmra.mxu0 %v1087
  %v1089 = vpop.f32.mrf.mxu0
  %v1090 = vadd.f32 %v1065, %v1089
  %1091 = vdwg.mxu0
  %v1092 = vadd.f32 %v901, %v1090
  %v1093 = vxor.u32 %v1092, 2147483648
  %v1094 = vmul.f32 %v1093, 1.442695
  %v1095 = vpow.pop %v1094
  %v1096 = vadd.f32 %v1095, 1.0
  %v1097 = vrcp.pop %v1096
  %v1098 = vmul.f32 %v1096, %v1097
  %v1099 = vsub.f32 1.0, %v1098
  %v1100 = vmul.f32 %v1097, %v1099
  %v1101 = vadd.f32 %v1097, %v1100
  %vm1102 = vweird.f32 %v1096
  %vm1103 = vweird.f32 %v1097
  %vm1104 = vmor %vm1102, %vm1103
  %v1105 = vsel %vm1104, %v1097, %v1101
  %v1106 = vand.u32 2147483647, %v1096
  %vm1107 = vcmp.eq.f32.partialorder %v1106, 8.507059e+37
  %v1108 = vand.u32 %v1096, 2147483648
  %v1109 = vor.u32 1.1754944e-38, %v1108
  %v1110 = vsel %vm1107, %v1109, %v1105
  %v1111 = vmul.f32 1.0, %v1110
  %v1112 = vmul.f32 %v1111, 2.0
  %v1113 = vsub.f32 %v1112, 1.0
  %v1114 = vmul.f32 %v1111, %v894
  %1116 = vrot.lane.b32.xlu0 %v1113, 64
  %v1117 = vpop.permute.xlu0 %1116
  %v1119 = vmul.f32 %v1111, %v1117
  %1121 = vrot.lane.b32.xlu0 %v1119, 32
  %v1122 = vpop.permute.xlu0 %1121
  %v1124 = vadd.f32 %v1114, %v1122
  %v1125 = vtanh.pop %v1124
  %1127 = vrot.lane.b32.xlu0 %v1125, 64
  %v1128 = vpop.permute.xlu0 %1127
  %v1130 = vmul.f32 %v1111, %v1128
  %v1131 = vld [vmem:[#allocation2 + $0x18] sm:$0xff]
  %1133 = vrot.lane.b32.xlu0 %v1130, 32
  %v1134 = vpop.permute.xlu0 %1133
  %v1135 = vsel %vm443, %v1134, 0
  %1137 = vmatpush.msra.mxu0 0.0
  %1138 = vmatpush.msra.mxu0 0.0
  %1139 = vmatpush.msra.mxu0 0.0
  %1140 = vmatpush.msra.mxu0 0.0
  %1141 = vmatpush.msra.mxu0 0.0
  %1142 = vmatpush.msra.mxu0 0.0
  %1143 = vmatpush.msra.mxu0 0.0
  %1144 = vmatpush.msra.mxu0 0.0
  %1145 = vmatpush.msra.mxu0 0.0
  %1146 = vmatpush.msra.mxu0 0.0
  %1147 = vmatpush.msra.mxu0 0.0
  %1148 = vmatpush.msra.mxu0 0.0
  %v1149 = vand.u32 %v441, 4294901760
  %1150 = vmatpush.msra.mxu0 %v1149
  %v1151 = vand.u32 %v440, 4294901760
  %1152 = vmatpush.msra.mxu0 %v1151
  %v1153 = vand.u32 %v439, 4294901760
  %1154 = vmatpush.msra.mxu0 %v1153
  %v1155 = vand.u32 %v438, 4294901760
  %1156 = vmatpush.msra.mxu0 %v1155
  %v1157 = vand.u32 %v1135, 4294901760
  %v1158 = vsub.f32 %v1135, %v1157
  %v1159 = vand.u32 %v1158, 4294901760
  %v1160 = vsub.f32 %v1158, %v1159
  %v1161 = vand.u32 %v1160, 4294901760
  %1162 = vmatmul.f32.gmra.mxu0 %v1161
  %v1163 = vpop.f32.mrf.mxu0
  %v1164 = vadd.f32 0.0, %v1163
  %1165 = vdwg.mxu0
  %1166 = vmatpush.msra.mxu0 0.0
  %1167 = vmatpush.msra.mxu0 0.0
  %1168 = vmatpush.msra.mxu0 0.0
  %1169 = vmatpush.msra.mxu0 0.0
  %1170 = vmatpush.msra.mxu0 0.0
  %1171 = vmatpush.msra.mxu0 0.0
  %1172 = vmatpush.msra.mxu0 0.0
  %1173 = vmatpush.msra.mxu0 0.0
  %1174 = vmatpush.msra.mxu0 0.0
  %1175 = vmatpush.msra.mxu0 0.0
  %1176 = vmatpush.msra.mxu0 0.0
  %1177 = vmatpush.msra.mxu0 0.0
  %v1178 = vand.u32 %v441, 4294901760
  %v1179 = vsub.f32 %v441, %v1178
  %v1180 = vand.u32 %v1179, 4294901760
  %v1181 = vsub.f32 %v1179, %v1180
  %v1182 = vand.u32 %v1181, 4294901760
  %1183 = vmatpush.msra.mxu0 %v1182
  %v1184 = vand.u32 %v440, 4294901760
  %v1185 = vsub.f32 %v440, %v1184
  %v1186 = vand.u32 %v1185, 4294901760
  %v1187 = vsub.f32 %v1185, %v1186
  %v1188 = vand.u32 %v1187, 4294901760
  %1189 = vmatpush.msra.mxu0 %v1188
  %v1190 = vand.u32 %v439, 4294901760
  %v1191 = vsub.f32 %v439, %v1190
  %v1192 = vand.u32 %v1191, 4294901760
  %v1193 = vsub.f32 %v1191, %v1192
  %v1194 = vand.u32 %v1193, 4294901760
  %1195 = vmatpush.msra.mxu0 %v1194
  %v1196 = vand.u32 %v438, 4294901760
  %v1197 = vsub.f32 %v438, %v1196
  %v1198 = vand.u32 %v1197, 4294901760
  %v1199 = vsub.f32 %v1197, %v1198
  %v1200 = vand.u32 %v1199, 4294901760
  %1201 = vmatpush.msra.mxu0 %v1200
  %v1202 = vand.u32 %v1135, 4294901760
  %1203 = vmatmul.f32.gmra.mxu0 %v1202
  %v1204 = vpop.f32.mrf.mxu0
  %v1205 = vadd.f32 %v1164, %v1204
  %1206 = vdwg.mxu0
  %1207 = vmatpush.msra.mxu0 0.0
  %1208 = vmatpush.msra.mxu0 0.0
  %1209 = vmatpush.msra.mxu0 0.0
  %1210 = vmatpush.msra.mxu0 0.0
  %1211 = vmatpush.msra.mxu0 0.0
  %1212 = vmatpush.msra.mxu0 0.0
  %1213 = vmatpush.msra.mxu0 0.0
  %1214 = vmatpush.msra.mxu0 0.0
  %1215 = vmatpush.msra.mxu0 0.0
  %1216 = vmatpush.msra.mxu0 0.0
  %1217 = vmatpush.msra.mxu0 0.0
  %1218 = vmatpush.msra.mxu0 0.0
  %v1219 = vand.u32 %v441, 4294901760
  %v1220 = vsub.f32 %v441, %v1219
  %1221 = vmatpush.msra.mxu0 %v1220
  %v1222 = vand.u32 %v440, 4294901760
  %v1223 = vsub.f32 %v440, %v1222
  %1224 = vmatpush.msra.mxu0 %v1223
  %v1225 = vand.u32 %v439, 4294901760
  %v1226 = vsub.f32 %v439, %v1225
  %1227 = vmatpush.msra.mxu0 %v1226
  %v1228 = vand.u32 %v438, 4294901760
  %v1229 = vsub.f32 %v438, %v1228
  %1230 = vmatpush.msra.mxu0 %v1229
  %v1231 = vand.u32 %v1135, 4294901760
  %v1232 = vsub.f32 %v1135, %v1231
  %1233 = vmatmul.f32.gmra.mxu0 %v1232
  %v1234 = vpop.f32.mrf.mxu0
  %v1235 = vadd.f32 %v1205, %v1234
  %1236 = vdwg.mxu0
  %1237 = vmatpush.msra.mxu0 0.0
  %1238 = vmatpush.msra.mxu0 0.0
  %1239 = vmatpush.msra.mxu0 0.0
  %1240 = vmatpush.msra.mxu0 0.0
  %1241 = vmatpush.msra.mxu0 0.0
  %1242 = vmatpush.msra.mxu0 0.0
  %1243 = vmatpush.msra.mxu0 0.0
  %1244 = vmatpush.msra.mxu0 0.0
  %1245 = vmatpush.msra.mxu0 0.0
  %1246 = vmatpush.msra.mxu0 0.0
  %1247 = vmatpush.msra.mxu0 0.0
  %1248 = vmatpush.msra.mxu0 0.0
  %v1249 = vand.u32 %v441, 4294901760
  %1250 = vmatpush.msra.mxu0 %v1249
  %v1251 = vand.u32 %v440, 4294901760
  %1252 = vmatpush.msra.mxu0 %v1251
  %v1253 = vand.u32 %v439, 4294901760
  %1254 = vmatpush.msra.mxu0 %v1253
  %v1255 = vand.u32 %v438, 4294901760
  %1256 = vmatpush.msra.mxu0 %v1255
  %v1257 = vand.u32 %v1135, 4294901760
  %v1258 = vsub.f32 %v1135, %v1257
  %v1259 = vand.u32 %v1258, 4294901760
  %1260 = vmatmul.f32.gmra.mxu0 %v1259
  %v1261 = vpop.f32.mrf.mxu0
  %v1262 = vadd.f32 %v1235, %v1261
  %1263 = vdwg.mxu0
  %1264 = vmatpush.msra.mxu0 0.0
  %1265 = vmatpush.msra.mxu0 0.0
  %1266 = vmatpush.msra.mxu0 0.0
  %1267 = vmatpush.msra.mxu0 0.0
  %1268 = vmatpush.msra.mxu0 0.0
  %1269 = vmatpush.msra.mxu0 0.0
  %1270 = vmatpush.msra.mxu0 0.0
  %1271 = vmatpush.msra.mxu0 0.0
  %1272 = vmatpush.msra.mxu0 0.0
  %1273 = vmatpush.msra.mxu0 0.0
  %1274 = vmatpush.msra.mxu0 0.0
  %1275 = vmatpush.msra.mxu0 0.0
  %v1276 = vand.u32 %v441, 4294901760
  %v1277 = vsub.f32 %v441, %v1276
  %v1278 = vand.u32 %v1277, 4294901760
  %1279 = vmatpush.msra.mxu0 %v1278
  %v1280 = vand.u32 %v440, 4294901760
  %v1281 = vsub.f32 %v440, %v1280
  %v1282 = vand.u32 %v1281, 4294901760
  %1283 = vmatpush.msra.mxu0 %v1282
  %v1284 = vand.u32 %v439, 4294901760
  %v1285 = vsub.f32 %v439, %v1284
  %v1286 = vand.u32 %v1285, 4294901760
  %1287 = vmatpush.msra.mxu0 %v1286
  %v1288 = vand.u32 %v438, 4294901760
  %v1289 = vsub.f32 %v438, %v1288
  %v1290 = vand.u32 %v1289, 4294901760
  %1291 = vmatpush.msra.mxu0 %v1290
  %v1292 = vand.u32 %v1135, 4294901760
  %1293 = vmatmul.f32.gmra.mxu0 %v1292
  %v1294 = vpop.f32.mrf.mxu0
  %v1295 = vadd.f32 %v1262, %v1294
  %1296 = vdwg.mxu0
  %1297 = vmatpush.msra.mxu0 0.0
  %1298 = vmatpush.msra.mxu0 0.0
  %1299 = vmatpush.msra.mxu0 0.0
  %1300 = vmatpush.msra.mxu0 0.0
  %1301 = vmatpush.msra.mxu0 0.0
  %1302 = vmatpush.msra.mxu0 0.0
  %1303 = vmatpush.msra.mxu0 0.0
  %1304 = vmatpush.msra.mxu0 0.0
  %1305 = vmatpush.msra.mxu0 0.0
  %1306 = vmatpush.msra.mxu0 0.0
  %1307 = vmatpush.msra.mxu0 0.0
  %1308 = vmatpush.msra.mxu0 0.0
  %v1309 = vand.u32 %v441, 4294901760
  %1310 = vmatpush.msra.mxu0 %v1309
  %v1311 = vand.u32 %v440, 4294901760
  %1312 = vmatpush.msra.mxu0 %v1311
  %v1313 = vand.u32 %v439, 4294901760
  %1314 = vmatpush.msra.mxu0 %v1313
  %v1315 = vand.u32 %v438, 4294901760
  %1316 = vmatpush.msra.mxu0 %v1315
  %v1317 = vand.u32 %v1135, 4294901760
  %1318 = vmatmul.f32.gmra.mxu0 %v1317
  %v1319 = vpop.f32.mrf.mxu0
  %v1320 = vadd.f32 %v1295, %v1319
  %1321 = vdwg.mxu0
  %v1322 = vadd.f32 %v1131, %v1320
  %v1323 = vxor.u32 %v1322, 2147483648
  %v1324 = vmul.f32 %v1323, 1.442695
  %v1325 = vpow.pop %v1324
  %v1326 = vadd.f32 %v1325, 1.0
  %v1327 = vrcp.pop %v1326
  %v1328 = vmul.f32 %v1326, %v1327
  %v1329 = vsub.f32 1.0, %v1328
  %v1330 = vmul.f32 %v1327, %v1329
  %v1331 = vadd.f32 %v1327, %v1330
  %vm1332 = vweird.f32 %v1326
  %vm1333 = vweird.f32 %v1327
  %vm1334 = vmor %vm1332, %vm1333
  %v1335 = vsel %vm1334, %v1327, %v1331
  %v1336 = vand.u32 2147483647, %v1326
  %vm1337 = vcmp.eq.f32.partialorder %v1336, 8.507059e+37
  %v1338 = vand.u32 %v1326, 2147483648
  %v1339 = vor.u32 1.1754944e-38, %v1338
  %v1340 = vsel %vm1337, %v1339, %v1335
  %v1341 = vmul.f32 1.0, %v1340
  %v1342 = vmul.f32 %v1341, 2.0
  %v1343 = vsub.f32 %v1342, 1.0
  %v1344 = vmul.f32 %v1341, %v1124
  %1346 = vrot.lane.b32.xlu0 %v1343, 64
  %v1347 = vpop.permute.xlu0 %1346
  %v1349 = vmul.f32 %v1341, %v1347
  %1351 = vrot.lane.b32.xlu0 %v1349, 32
  %v1352 = vpop.permute.xlu0 %1351
  %v1354 = vadd.f32 %v1344, %v1352
  %v1355 = vtanh.pop %v1354
  %1357 = vrot.lane.b32.xlu0 %v1355, 64
  %v1358 = vpop.permute.xlu0 %1357
  %v1360 = vmul.f32 %v1341, %v1358
  %v1361 = vld [vmem:[#allocation2 + $0x20] sm:$0xff]
  %1363 = vrot.lane.b32.xlu0 %v1360, 32
  %v1364 = vpop.permute.xlu0 %1363
  %v1365 = vsel %vm443, %v1364, 0
  %1367 = vmatpush.msra.mxu0 0.0
  %1368 = vmatpush.msra.mxu0 0.0
  %1369 = vmatpush.msra.mxu0 0.0
  %1370 = vmatpush.msra.mxu0 0.0
  %1371 = vmatpush.msra.mxu0 0.0
  %1372 = vmatpush.msra.mxu0 0.0
  %1373 = vmatpush.msra.mxu0 0.0
  %1374 = vmatpush.msra.mxu0 0.0
  %1375 = vmatpush.msra.mxu0 0.0
  %1376 = vmatpush.msra.mxu0 0.0
  %1377 = vmatpush.msra.mxu0 0.0
  %1378 = vmatpush.msra.mxu0 0.0
  %v1379 = vand.u32 %v441, 4294901760
  %1380 = vmatpush.msra.mxu0 %v1379
  %v1381 = vand.u32 %v440, 4294901760
  %1382 = vmatpush.msra.mxu0 %v1381
  %v1383 = vand.u32 %v439, 4294901760
  %1384 = vmatpush.msra.mxu0 %v1383
  %v1385 = vand.u32 %v438, 4294901760
  %1386 = vmatpush.msra.mxu0 %v1385
  %v1387 = vand.u32 %v1365, 4294901760
  %v1388 = vsub.f32 %v1365, %v1387
  %v1389 = vand.u32 %v1388, 4294901760
  %v1390 = vsub.f32 %v1388, %v1389
  %v1391 = vand.u32 %v1390, 4294901760
  %1392 = vmatmul.f32.gmra.mxu0 %v1391
  %v1393 = vpop.f32.mrf.mxu0
  %v1394 = vadd.f32 0.0, %v1393
  %1395 = vdwg.mxu0
  %1396 = vmatpush.msra.mxu0 0.0
  %1397 = vmatpush.msra.mxu0 0.0
  %1398 = vmatpush.msra.mxu0 0.0
  %1399 = vmatpush.msra.mxu0 0.0
  %1400 = vmatpush.msra.mxu0 0.0
  %1401 = vmatpush.msra.mxu0 0.0
  %1402 = vmatpush.msra.mxu0 0.0
  %1403 = vmatpush.msra.mxu0 0.0
  %1404 = vmatpush.msra.mxu0 0.0
  %1405 = vmatpush.msra.mxu0 0.0
  %1406 = vmatpush.msra.mxu0 0.0
  %1407 = vmatpush.msra.mxu0 0.0
  %v1408 = vand.u32 %v441, 4294901760
  %v1409 = vsub.f32 %v441, %v1408
  %v1410 = vand.u32 %v1409, 4294901760
  %v1411 = vsub.f32 %v1409, %v1410
  %v1412 = vand.u32 %v1411, 4294901760
  %1413 = vmatpush.msra.mxu0 %v1412
  %v1414 = vand.u32 %v440, 4294901760
  %v1415 = vsub.f32 %v440, %v1414
  %v1416 = vand.u32 %v1415, 4294901760
  %v1417 = vsub.f32 %v1415, %v1416
  %v1418 = vand.u32 %v1417, 4294901760
  %1419 = vmatpush.msra.mxu0 %v1418
  %v1420 = vand.u32 %v439, 4294901760
  %v1421 = vsub.f32 %v439, %v1420
  %v1422 = vand.u32 %v1421, 4294901760
  %v1423 = vsub.f32 %v1421, %v1422
  %v1424 = vand.u32 %v1423, 4294901760
  %1425 = vmatpush.msra.mxu0 %v1424
  %v1426 = vand.u32 %v438, 4294901760
  %v1427 = vsub.f32 %v438, %v1426
  %v1428 = vand.u32 %v1427, 4294901760
  %v1429 = vsub.f32 %v1427, %v1428
  %v1430 = vand.u32 %v1429, 4294901760
  %1431 = vmatpush.msra.mxu0 %v1430
  %v1432 = vand.u32 %v1365, 4294901760
  %1433 = vmatmul.f32.gmra.mxu0 %v1432
  %v1434 = vpop.f32.mrf.mxu0
  %v1435 = vadd.f32 %v1394, %v1434
  %1436 = vdwg.mxu0
  %1437 = vmatpush.msra.mxu0 0.0
  %1438 = vmatpush.msra.mxu0 0.0
  %1439 = vmatpush.msra.mxu0 0.0
  %1440 = vmatpush.msra.mxu0 0.0
  %1441 = vmatpush.msra.mxu0 0.0
  %1442 = vmatpush.msra.mxu0 0.0
  %1443 = vmatpush.msra.mxu0 0.0
  %1444 = vmatpush.msra.mxu0 0.0
  %1445 = vmatpush.msra.mxu0 0.0
  %1446 = vmatpush.msra.mxu0 0.0
  %1447 = vmatpush.msra.mxu0 0.0
  %1448 = vmatpush.msra.mxu0 0.0
  %v1449 = vand.u32 %v441, 4294901760
  %v1450 = vsub.f32 %v441, %v1449
  %1451 = vmatpush.msra.mxu0 %v1450
  %v1452 = vand.u32 %v440, 4294901760
  %v1453 = vsub.f32 %v440, %v1452
  %1454 = vmatpush.msra.mxu0 %v1453
  %v1455 = vand.u32 %v439, 4294901760
  %v1456 = vsub.f32 %v439, %v1455
  %1457 = vmatpush.msra.mxu0 %v1456
  %v1458 = vand.u32 %v438, 4294901760
  %v1459 = vsub.f32 %v438, %v1458
  %1460 = vmatpush.msra.mxu0 %v1459
  %v1461 = vand.u32 %v1365, 4294901760
  %v1462 = vsub.f32 %v1365, %v1461
  %1463 = vmatmul.f32.gmra.mxu0 %v1462
  %v1464 = vpop.f32.mrf.mxu0
  %v1465 = vadd.f32 %v1435, %v1464
  %1466 = vdwg.mxu0
  %1467 = vmatpush.msra.mxu0 0.0
  %1468 = vmatpush.msra.mxu0 0.0
  %1469 = vmatpush.msra.mxu0 0.0
  %1470 = vmatpush.msra.mxu0 0.0
  %1471 = vmatpush.msra.mxu0 0.0
  %1472 = vmatpush.msra.mxu0 0.0
  %1473 = vmatpush.msra.mxu0 0.0
  %1474 = vmatpush.msra.mxu0 0.0
  %1475 = vmatpush.msra.mxu0 0.0
  %1476 = vmatpush.msra.mxu0 0.0
  %1477 = vmatpush.msra.mxu0 0.0
  %1478 = vmatpush.msra.mxu0 0.0
  %v1479 = vand.u32 %v441, 4294901760
  %1480 = vmatpush.msra.mxu0 %v1479
  %v1481 = vand.u32 %v440, 4294901760
  %1482 = vmatpush.msra.mxu0 %v1481
  %v1483 = vand.u32 %v439, 4294901760
  %1484 = vmatpush.msra.mxu0 %v1483
  %v1485 = vand.u32 %v438, 4294901760
  %1486 = vmatpush.msra.mxu0 %v1485
  %v1487 = vand.u32 %v1365, 4294901760
  %v1488 = vsub.f32 %v1365, %v1487
  %v1489 = vand.u32 %v1488, 4294901760
  %1490 = vmatmul.f32.gmra.mxu0 %v1489
  %v1491 = vpop.f32.mrf.mxu0
  %v1492 = vadd.f32 %v1465, %v1491
  %1493 = vdwg.mxu0
  %1494 = vmatpush.msra.mxu0 0.0
  %1495 = vmatpush.msra.mxu0 0.0
  %1496 = vmatpush.msra.mxu0 0.0
  %1497 = vmatpush.msra.mxu0 0.0
  %1498 = vmatpush.msra.mxu0 0.0
  %1499 = vmatpush.msra.mxu0 0.0
  %1500 = vmatpush.msra.mxu0 0.0
  %1501 = vmatpush.msra.mxu0 0.0
  %1502 = vmatpush.msra.mxu0 0.0
  %1503 = vmatpush.msra.mxu0 0.0
  %1504 = vmatpush.msra.mxu0 0.0
  %1505 = vmatpush.msra.mxu0 0.0
  %v1506 = vand.u32 %v441, 4294901760
  %v1507 = vsub.f32 %v441, %v1506
  %v1508 = vand.u32 %v1507, 4294901760
  %1509 = vmatpush.msra.mxu0 %v1508
  %v1510 = vand.u32 %v440, 4294901760
  %v1511 = vsub.f32 %v440, %v1510
  %v1512 = vand.u32 %v1511, 4294901760
  %1513 = vmatpush.msra.mxu0 %v1512
  %v1514 = vand.u32 %v439, 4294901760
  %v1515 = vsub.f32 %v439, %v1514
  %v1516 = vand.u32 %v1515, 4294901760
  %1517 = vmatpush.msra.mxu0 %v1516
  %v1518 = vand.u32 %v438, 4294901760
  %v1519 = vsub.f32 %v438, %v1518
  %v1520 = vand.u32 %v1519, 4294901760
  %1521 = vmatpush.msra.mxu0 %v1520
  %v1522 = vand.u32 %v1365, 4294901760
  %1523 = vmatmul.f32.gmra.mxu0 %v1522
  %v1524 = vpop.f32.mrf.mxu0
  %v1525 = vadd.f32 %v1492, %v1524
  %1526 = vdwg.mxu0
  %1527 = vmatpush.msra.mxu0 0.0
  %1528 = vmatpush.msra.mxu0 0.0
  %1529 = vmatpush.msra.mxu0 0.0
  %1530 = vmatpush.msra.mxu0 0.0
  %1531 = vmatpush.msra.mxu0 0.0
  %1532 = vmatpush.msra.mxu0 0.0
  %1533 = vmatpush.msra.mxu0 0.0
  %1534 = vmatpush.msra.mxu0 0.0
  %1535 = vmatpush.msra.mxu0 0.0
  %1536 = vmatpush.msra.mxu0 0.0
  %1537 = vmatpush.msra.mxu0 0.0
  %1538 = vmatpush.msra.mxu0 0.0
  %v1539 = vand.u32 %v441, 4294901760
  %1540 = vmatpush.msra.mxu0 %v1539
  %v1541 = vand.u32 %v440, 4294901760
  %1542 = vmatpush.msra.mxu0 %v1541
  %v1543 = vand.u32 %v439, 4294901760
  %1544 = vmatpush.msra.mxu0 %v1543
  %v1545 = vand.u32 %v438, 4294901760
  %1546 = vmatpush.msra.mxu0 %v1545
  %v1547 = vand.u32 %v1365, 4294901760
  %1548 = vmatmul.f32.gmra.mxu0 %v1547
  %v1549 = vpop.f32.mrf.mxu0
  %v1550 = vadd.f32 %v1525, %v1549
  %1551 = vdwg.mxu0
  %v1552 = vadd.f32 %v1361, %v1550
  %v1553 = vxor.u32 %v1552, 2147483648
  %v1554 = vmul.f32 %v1553, 1.442695
  %v1555 = vpow.pop %v1554
  %v1556 = vadd.f32 %v1555, 1.0
  %v1557 = vrcp.pop %v1556
  %v1558 = vmul.f32 %v1556, %v1557
  %v1559 = vsub.f32 1.0, %v1558
  %v1560 = vmul.f32 %v1557, %v1559
  %v1561 = vadd.f32 %v1557, %v1560
  %vm1562 = vweird.f32 %v1556
  %vm1563 = vweird.f32 %v1557
  %vm1564 = vmor %vm1562, %vm1563
  %v1565 = vsel %vm1564, %v1557, %v1561
  %v1566 = vand.u32 2147483647, %v1556
  %vm1567 = vcmp.eq.f32.partialorder %v1566, 8.507059e+37
  %v1568 = vand.u32 %v1556, 2147483648
  %v1569 = vor.u32 1.1754944e-38, %v1568
  %v1570 = vsel %vm1567, %v1569, %v1565
  %v1571 = vmul.f32 1.0, %v1570
  %v1572 = vmul.f32 %v1571, 2.0
  %v1573 = vsub.f32 %v1572, 1.0
  %v1574 = vmul.f32 %v1571, %v1354
  %1576 = vrot.lane.b32.xlu0 %v1573, 64
  %v1577 = vpop.permute.xlu0 %1576
  %v1579 = vmul.f32 %v1571, %v1577
  %1581 = vrot.lane.b32.xlu0 %v1579, 32
  %v1582 = vpop.permute.xlu0 %1581
  %v1584 = vadd.f32 %v1574, %v1582
  %v1585 = vtanh.pop %v1584
  %1587 = vrot.lane.b32.xlu0 %v1585, 64
  %v1588 = vpop.permute.xlu0 %1587
  %v1590 = vmul.f32 %v1571, %v1588
  %v1591 = vld [vmem:[#allocation2 + $0x28] sm:$0xff]
  %1593 = vrot.lane.b32.xlu0 %v1590, 32
  %v1594 = vpop.permute.xlu0 %1593
  %v1595 = vsel %vm443, %v1594, 0
  %1597 = vmatpush.msra.mxu0 0.0
  %1598 = vmatpush.msra.mxu0 0.0
  %1599 = vmatpush.msra.mxu0 0.0
  %1600 = vmatpush.msra.mxu0 0.0
  %1601 = vmatpush.msra.mxu0 0.0
  %1602 = vmatpush.msra.mxu0 0.0
  %1603 = vmatpush.msra.mxu0 0.0
  %1604 = vmatpush.msra.mxu0 0.0
  %1605 = vmatpush.msra.mxu0 0.0
  %1606 = vmatpush.msra.mxu0 0.0
  %1607 = vmatpush.msra.mxu0 0.0
  %1608 = vmatpush.msra.mxu0 0.0
  %v1609 = vand.u32 %v441, 4294901760
  %1610 = vmatpush.msra.mxu0 %v1609
  %v1611 = vand.u32 %v440, 4294901760
  %1612 = vmatpush.msra.mxu0 %v1611
  %v1613 = vand.u32 %v439, 4294901760
  %1614 = vmatpush.msra.mxu0 %v1613
  %v1615 = vand.u32 %v438, 4294901760
  %1616 = vmatpush.msra.mxu0 %v1615
  %v1617 = vand.u32 %v1595, 4294901760
  %v1618 = vsub.f32 %v1595, %v1617
  %v1619 = vand.u32 %v1618, 4294901760
  %v1620 = vsub.f32 %v1618, %v1619
  %v1621 = vand.u32 %v1620, 4294901760
  %1622 = vmatmul.f32.gmra.mxu0 %v1621
  %v1623 = vpop.f32.mrf.mxu0
  %v1624 = vadd.f32 0.0, %v1623
  %1625 = vdwg.mxu0
  %1626 = vmatpush.msra.mxu0 0.0
  %1627 = vmatpush.msra.mxu0 0.0
  %1628 = vmatpush.msra.mxu0 0.0
  %1629 = vmatpush.msra.mxu0 0.0
  %1630 = vmatpush.msra.mxu0 0.0
  %1631 = vmatpush.msra.mxu0 0.0
  %1632 = vmatpush.msra.mxu0 0.0
  %1633 = vmatpush.msra.mxu0 0.0
  %1634 = vmatpush.msra.mxu0 0.0
  %1635 = vmatpush.msra.mxu0 0.0
  %1636 = vmatpush.msra.mxu0 0.0
  %1637 = vmatpush.msra.mxu0 0.0
  %v1638 = vand.u32 %v441, 4294901760
  %v1639 = vsub.f32 %v441, %v1638
  %v1640 = vand.u32 %v1639, 4294901760
  %v1641 = vsub.f32 %v1639, %v1640
  %v1642 = vand.u32 %v1641, 4294901760
  %1643 = vmatpush.msra.mxu0 %v1642
  %v1644 = vand.u32 %v440, 4294901760
  %v1645 = vsub.f32 %v440, %v1644
  %v1646 = vand.u32 %v1645, 4294901760
  %v1647 = vsub.f32 %v1645, %v1646
  %v1648 = vand.u32 %v1647, 4294901760
  %1649 = vmatpush.msra.mxu0 %v1648
  %v1650 = vand.u32 %v439, 4294901760
  %v1651 = vsub.f32 %v439, %v1650
  %v1652 = vand.u32 %v1651, 4294901760
  %v1653 = vsub.f32 %v1651, %v1652
  %v1654 = vand.u32 %v1653, 4294901760
  %1655 = vmatpush.msra.mxu0 %v1654
  %v1656 = vand.u32 %v438, 4294901760
  %v1657 = vsub.f32 %v438, %v1656
  %v1658 = vand.u32 %v1657, 4294901760
  %v1659 = vsub.f32 %v1657, %v1658
  %v1660 = vand.u32 %v1659, 4294901760
  %1661 = vmatpush.msra.mxu0 %v1660
  %v1662 = vand.u32 %v1595, 4294901760
  %1663 = vmatmul.f32.gmra.mxu0 %v1662
  %v1664 = vpop.f32.mrf.mxu0
  %v1665 = vadd.f32 %v1624, %v1664
  %1666 = vdwg.mxu0
  %1667 = vmatpush.msra.mxu0 0.0
  %1668 = vmatpush.msra.mxu0 0.0
  %1669 = vmatpush.msra.mxu0 0.0
  %1670 = vmatpush.msra.mxu0 0.0
  %1671 = vmatpush.msra.mxu0 0.0
  %1672 = vmatpush.msra.mxu0 0.0
  %1673 = vmatpush.msra.mxu0 0.0
  %1674 = vmatpush.msra.mxu0 0.0
  %1675 = vmatpush.msra.mxu0 0.0
  %1676 = vmatpush.msra.mxu0 0.0
  %1677 = vmatpush.msra.mxu0 0.0
  %1678 = vmatpush.msra.mxu0 0.0
  %v1679 = vand.u32 %v441, 4294901760
  %v1680 = vsub.f32 %v441, %v1679
  %1681 = vmatpush.msra.mxu0 %v1680
  %v1682 = vand.u32 %v440, 4294901760
  %v1683 = vsub.f32 %v440, %v1682
  %1684 = vmatpush.msra.mxu0 %v1683
  %v1685 = vand.u32 %v439, 4294901760
  %v1686 = vsub.f32 %v439, %v1685
  %1687 = vmatpush.msra.mxu0 %v1686
  %v1688 = vand.u32 %v438, 4294901760
  %v1689 = vsub.f32 %v438, %v1688
  %1690 = vmatpush.msra.mxu0 %v1689
  %v1691 = vand.u32 %v1595, 4294901760
  %v1692 = vsub.f32 %v1595, %v1691
  %1693 = vmatmul.f32.gmra.mxu0 %v1692
  %v1694 = vpop.f32.mrf.mxu0
  %v1695 = vadd.f32 %v1665, %v1694
  %1696 = vdwg.mxu0
  %1697 = vmatpush.msra.mxu0 0.0
  %1698 = vmatpush.msra.mxu0 0.0
  %1699 = vmatpush.msra.mxu0 0.0
  %1700 = vmatpush.msra.mxu0 0.0
  %1701 = vmatpush.msra.mxu0 0.0
  %1702 = vmatpush.msra.mxu0 0.0
  %1703 = vmatpush.msra.mxu0 0.0
  %1704 = vmatpush.msra.mxu0 0.0
  %1705 = vmatpush.msra.mxu0 0.0
  %1706 = vmatpush.msra.mxu0 0.0
  %1707 = vmatpush.msra.mxu0 0.0
  %1708 = vmatpush.msra.mxu0 0.0
  %v1709 = vand.u32 %v441, 4294901760
  %1710 = vmatpush.msra.mxu0 %v1709
  %v1711 = vand.u32 %v440, 4294901760
  %1712 = vmatpush.msra.mxu0 %v1711
  %v1713 = vand.u32 %v439, 4294901760
  %1714 = vmatpush.msra.mxu0 %v1713
  %v1715 = vand.u32 %v438, 4294901760
  %1716 = vmatpush.msra.mxu0 %v1715
  %v1717 = vand.u32 %v1595, 4294901760
  %v1718 = vsub.f32 %v1595, %v1717
  %v1719 = vand.u32 %v1718, 4294901760
  %1720 = vmatmul.f32.gmra.mxu0 %v1719
  %v1721 = vpop.f32.mrf.mxu0
  %v1722 = vadd.f32 %v1695, %v1721
  %1723 = vdwg.mxu0
  %1724 = vmatpush.msra.mxu0 0.0
  %1725 = vmatpush.msra.mxu0 0.0
  %1726 = vmatpush.msra.mxu0 0.0
  %1727 = vmatpush.msra.mxu0 0.0
  %1728 = vmatpush.msra.mxu0 0.0
  %1729 = vmatpush.msra.mxu0 0.0
  %1730 = vmatpush.msra.mxu0 0.0
  %1731 = vmatpush.msra.mxu0 0.0
  %1732 = vmatpush.msra.mxu0 0.0
  %1733 = vmatpush.msra.mxu0 0.0
  %1734 = vmatpush.msra.mxu0 0.0
  %1735 = vmatpush.msra.mxu0 0.0
  %v1736 = vand.u32 %v441, 4294901760
  %v1737 = vsub.f32 %v441, %v1736
  %v1738 = vand.u32 %v1737, 4294901760
  %1739 = vmatpush.msra.mxu0 %v1738
  %v1740 = vand.u32 %v440, 4294901760
  %v1741 = vsub.f32 %v440, %v1740
  %v1742 = vand.u32 %v1741, 4294901760
  %1743 = vmatpush.msra.mxu0 %v1742
  %v1744 = vand.u32 %v439, 4294901760
  %v1745 = vsub.f32 %v439, %v1744
  %v1746 = vand.u32 %v1745, 4294901760
  %1747 = vmatpush.msra.mxu0 %v1746
  %v1748 = vand.u32 %v438, 4294901760
  %v1749 = vsub.f32 %v438, %v1748
  %v1750 = vand.u32 %v1749, 4294901760
  %1751 = vmatpush.msra.mxu0 %v1750
  %v1752 = vand.u32 %v1595, 4294901760
  %1753 = vmatmul.f32.gmra.mxu0 %v1752
  %v1754 = vpop.f32.mrf.mxu0
  %v1755 = vadd.f32 %v1722, %v1754
  %1756 = vdwg.mxu0
  %1757 = vmatpush.msra.mxu0 0.0
  %1758 = vmatpush.msra.mxu0 0.0
  %1759 = vmatpush.msra.mxu0 0.0
  %1760 = vmatpush.msra.mxu0 0.0
  %1761 = vmatpush.msra.mxu0 0.0
  %1762 = vmatpush.msra.mxu0 0.0
  %1763 = vmatpush.msra.mxu0 0.0
  %1764 = vmatpush.msra.mxu0 0.0
  %1765 = vmatpush.msra.mxu0 0.0
  %1766 = vmatpush.msra.mxu0 0.0
  %1767 = vmatpush.msra.mxu0 0.0
  %1768 = vmatpush.msra.mxu0 0.0
  %v1769 = vand.u32 %v441, 4294901760
  %1770 = vmatpush.msra.mxu0 %v1769
  %v1771 = vand.u32 %v440, 4294901760
  %1772 = vmatpush.msra.mxu0 %v1771
  %v1773 = vand.u32 %v439, 4294901760
  %1774 = vmatpush.msra.mxu0 %v1773
  %v1775 = vand.u32 %v438, 4294901760
  %1776 = vmatpush.msra.mxu0 %v1775
  %v1777 = vand.u32 %v1595, 4294901760
  %1778 = vmatmul.f32.gmra.mxu0 %v1777
  %v1779 = vpop.f32.mrf.mxu0
  %v1780 = vadd.f32 %v1755, %v1779
  %1781 = vdwg.mxu0
  %v1782 = vadd.f32 %v1591, %v1780
  %v1783 = vxor.u32 %v1782, 2147483648
  %v1784 = vmul.f32 %v1783, 1.442695
  %v1785 = vpow.pop %v1784
  %v1786 = vadd.f32 %v1785, 1.0
  %v1787 = vrcp.pop %v1786
  %v1788 = vmul.f32 %v1786, %v1787
  %v1789 = vsub.f32 1.0, %v1788
  %v1790 = vmul.f32 %v1787, %v1789
  %v1791 = vadd.f32 %v1787, %v1790
  %vm1792 = vweird.f32 %v1786
  %vm1793 = vweird.f32 %v1787
  %vm1794 = vmor %vm1792, %vm1793
  %v1795 = vsel %vm1794, %v1787, %v1791
  %v1796 = vand.u32 2147483647, %v1786
  %vm1797 = vcmp.eq.f32.partialorder %v1796, 8.507059e+37
  %v1798 = vand.u32 %v1786, 2147483648
  %v1799 = vor.u32 1.1754944e-38, %v1798
  %v1800 = vsel %vm1797, %v1799, %v1795
  %v1801 = vmul.f32 1.0, %v1800
  %v1802 = vmul.f32 %v1801, 2.0
  %v1803 = vsub.f32 %v1802, 1.0
  %v1804 = vmul.f32 %v1801, %v1584
  %1806 = vrot.lane.b32.xlu0 %v1803, 64
  %v1807 = vpop.permute.xlu0 %1806
  %v1809 = vmul.f32 %v1801, %v1807
  %1811 = vrot.lane.b32.xlu0 %v1809, 32
  %v1812 = vpop.permute.xlu0 %1811
  %v1814 = vadd.f32 %v1804, %v1812
  %v1815 = vtanh.pop %v1814
  %1817 = vrot.lane.b32.xlu0 %v1815, 64
  %v1818 = vpop.permute.xlu0 %1817
  %v1820 = vmul.f32 %v1801, %v1818
  %v1821 = vld [vmem:[#allocation2 + $0x30] sm:$0xff]
  %1823 = vrot.lane.b32.xlu0 %v1820, 32
  %v1824 = vpop.permute.xlu0 %1823
  %v1825 = vsel %vm443, %v1824, 0
  %1827 = vmatpush.msra.mxu0 0.0
  %1828 = vmatpush.msra.mxu0 0.0
  %1829 = vmatpush.msra.mxu0 0.0
  %1830 = vmatpush.msra.mxu0 0.0
  %1831 = vmatpush.msra.mxu0 0.0
  %1832 = vmatpush.msra.mxu0 0.0
  %1833 = vmatpush.msra.mxu0 0.0
  %1834 = vmatpush.msra.mxu0 0.0
  %1835 = vmatpush.msra.mxu0 0.0
  %1836 = vmatpush.msra.mxu0 0.0
  %1837 = vmatpush.msra.mxu0 0.0
  %1838 = vmatpush.msra.mxu0 0.0
  %v1839 = vand.u32 %v441, 4294901760
  %1840 = vmatpush.msra.mxu0 %v1839
  %v1841 = vand.u32 %v440, 4294901760
  %1842 = vmatpush.msra.mxu0 %v1841
  %v1843 = vand.u32 %v439, 4294901760
  %1844 = vmatpush.msra.mxu0 %v1843
  %v1845 = vand.u32 %v438, 4294901760
  %1846 = vmatpush.msra.mxu0 %v1845
  %v1847 = vand.u32 %v1825, 4294901760
  %v1848 = vsub.f32 %v1825, %v1847
  %v1849 = vand.u32 %v1848, 4294901760
  %v1850 = vsub.f32 %v1848, %v1849
  %v1851 = vand.u32 %v1850, 4294901760
  %1852 = vmatmul.f32.gmra.mxu0 %v1851
  %v1853 = vpop.f32.mrf.mxu0
  %v1854 = vadd.f32 0.0, %v1853
  %1855 = vdwg.mxu0
  %1856 = vmatpush.msra.mxu0 0.0
  %1857 = vmatpush.msra.mxu0 0.0
  %1858 = vmatpush.msra.mxu0 0.0
  %1859 = vmatpush.msra.mxu0 0.0
  %1860 = vmatpush.msra.mxu0 0.0
  %1861 = vmatpush.msra.mxu0 0.0
  %1862 = vmatpush.msra.mxu0 0.0
  %1863 = vmatpush.msra.mxu0 0.0
  %1864 = vmatpush.msra.mxu0 0.0
  %1865 = vmatpush.msra.mxu0 0.0
  %1866 = vmatpush.msra.mxu0 0.0
  %1867 = vmatpush.msra.mxu0 0.0
  %v1868 = vand.u32 %v441, 4294901760
  %v1869 = vsub.f32 %v441, %v1868
  %v1870 = vand.u32 %v1869, 4294901760
  %v1871 = vsub.f32 %v1869, %v1870
  %v1872 = vand.u32 %v1871, 4294901760
  %1873 = vmatpush.msra.mxu0 %v1872
  %v1874 = vand.u32 %v440, 4294901760
  %v1875 = vsub.f32 %v440, %v1874
  %v1876 = vand.u32 %v1875, 4294901760
  %v1877 = vsub.f32 %v1875, %v1876
  %v1878 = vand.u32 %v1877, 4294901760
  %1879 = vmatpush.msra.mxu0 %v1878
  %v1880 = vand.u32 %v439, 4294901760
  %v1881 = vsub.f32 %v439, %v1880
  %v1882 = vand.u32 %v1881, 4294901760
  %v1883 = vsub.f32 %v1881, %v1882
  %v1884 = vand.u32 %v1883, 4294901760
  %1885 = vmatpush.msra.mxu0 %v1884
  %v1886 = vand.u32 %v438, 4294901760
  %v1887 = vsub.f32 %v438, %v1886
  %v1888 = vand.u32 %v1887, 4294901760
  %v1889 = vsub.f32 %v1887, %v1888
  %v1890 = vand.u32 %v1889, 4294901760
  %1891 = vmatpush.msra.mxu0 %v1890
  %v1892 = vand.u32 %v1825, 4294901760
  %1893 = vmatmul.f32.gmra.mxu0 %v1892
  %v1894 = vpop.f32.mrf.mxu0
  %v1895 = vadd.f32 %v1854, %v1894
  %1896 = vdwg.mxu0
  %1897 = vmatpush.msra.mxu0 0.0
  %1898 = vmatpush.msra.mxu0 0.0
  %1899 = vmatpush.msra.mxu0 0.0
  %1900 = vmatpush.msra.mxu0 0.0
  %1901 = vmatpush.msra.mxu0 0.0
  %1902 = vmatpush.msra.mxu0 0.0
  %1903 = vmatpush.msra.mxu0 0.0
  %1904 = vmatpush.msra.mxu0 0.0
  %1905 = vmatpush.msra.mxu0 0.0
  %1906 = vmatpush.msra.mxu0 0.0
  %1907 = vmatpush.msra.mxu0 0.0
  %1908 = vmatpush.msra.mxu0 0.0
  %v1909 = vand.u32 %v441, 4294901760
  %v1910 = vsub.f32 %v441, %v1909
  %1911 = vmatpush.msra.mxu0 %v1910
  %v1912 = vand.u32 %v440, 4294901760
  %v1913 = vsub.f32 %v440, %v1912
  %1914 = vmatpush.msra.mxu0 %v1913
  %v1915 = vand.u32 %v439, 4294901760
  %v1916 = vsub.f32 %v439, %v1915
  %1917 = vmatpush.msra.mxu0 %v1916
  %v1918 = vand.u32 %v438, 4294901760
  %v1919 = vsub.f32 %v438, %v1918
  %1920 = vmatpush.msra.mxu0 %v1919
  %v1921 = vand.u32 %v1825, 4294901760
  %v1922 = vsub.f32 %v1825, %v1921
  %1923 = vmatmul.f32.gmra.mxu0 %v1922
  %v1924 = vpop.f32.mrf.mxu0
  %v1925 = vadd.f32 %v1895, %v1924
  %1926 = vdwg.mxu0
  %1927 = vmatpush.msra.mxu0 0.0
  %1928 = vmatpush.msra.mxu0 0.0
  %1929 = vmatpush.msra.mxu0 0.0
  %1930 = vmatpush.msra.mxu0 0.0
  %1931 = vmatpush.msra.mxu0 0.0
  %1932 = vmatpush.msra.mxu0 0.0
  %1933 = vmatpush.msra.mxu0 0.0
  %1934 = vmatpush.msra.mxu0 0.0
  %1935 = vmatpush.msra.mxu0 0.0
  %1936 = vmatpush.msra.mxu0 0.0
  %1937 = vmatpush.msra.mxu0 0.0
  %1938 = vmatpush.msra.mxu0 0.0
  %v1939 = vand.u32 %v441, 4294901760
  %1940 = vmatpush.msra.mxu0 %v1939
  %v1941 = vand.u32 %v440, 4294901760
  %1942 = vmatpush.msra.mxu0 %v1941
  %v1943 = vand.u32 %v439, 4294901760
  %1944 = vmatpush.msra.mxu0 %v1943
  %v1945 = vand.u32 %v438, 4294901760
  %1946 = vmatpush.msra.mxu0 %v1945
  %v1947 = vand.u32 %v1825, 4294901760
  %v1948 = vsub.f32 %v1825, %v1947
  %v1949 = vand.u32 %v1948, 4294901760
  %1950 = vmatmul.f32.gmra.mxu0 %v1949
  %v1951 = vpop.f32.mrf.mxu0
  %v1952 = vadd.f32 %v1925, %v1951
  %1953 = vdwg.mxu0
  %1954 = vmatpush.msra.mxu0 0.0
  %1955 = vmatpush.msra.mxu0 0.0
  %1956 = vmatpush.msra.mxu0 0.0
  %1957 = vmatpush.msra.mxu0 0.0
  %1958 = vmatpush.msra.mxu0 0.0
  %1959 = vmatpush.msra.mxu0 0.0
  %1960 = vmatpush.msra.mxu0 0.0
  %1961 = vmatpush.msra.mxu0 0.0
  %1962 = vmatpush.msra.mxu0 0.0
  %1963 = vmatpush.msra.mxu0 0.0
  %1964 = vmatpush.msra.mxu0 0.0
  %1965 = vmatpush.msra.mxu0 0.0
  %v1966 = vand.u32 %v441, 4294901760
  %v1967 = vsub.f32 %v441, %v1966
  %v1968 = vand.u32 %v1967, 4294901760
  %1969 = vmatpush.msra.mxu0 %v1968
  %v1970 = vand.u32 %v440, 4294901760
  %v1971 = vsub.f32 %v440, %v1970
  %v1972 = vand.u32 %v1971, 4294901760
  %1973 = vmatpush.msra.mxu0 %v1972
  %v1974 = vand.u32 %v439, 4294901760
  %v1975 = vsub.f32 %v439, %v1974
  %v1976 = vand.u32 %v1975, 4294901760
  %1977 = vmatpush.msra.mxu0 %v1976
  %v1978 = vand.u32 %v438, 4294901760
  %v1979 = vsub.f32 %v438, %v1978
  %v1980 = vand.u32 %v1979, 4294901760
  %1981 = vmatpush.msra.mxu0 %v1980
  %v1982 = vand.u32 %v1825, 4294901760
  %1983 = vmatmul.f32.gmra.mxu0 %v1982
  %v1984 = vpop.f32.mrf.mxu0
  %v1985 = vadd.f32 %v1952, %v1984
  %1986 = vdwg.mxu0
  %1987 = vmatpush.msra.mxu0 0.0
  %1988 = vmatpush.msra.mxu0 0.0
  %1989 = vmatpush.msra.mxu0 0.0
  %1990 = vmatpush.msra.mxu0 0.0
  %1991 = vmatpush.msra.mxu0 0.0
  %1992 = vmatpush.msra.mxu0 0.0
  %1993 = vmatpush.msra.mxu0 0.0
  %1994 = vmatpush.msra.mxu0 0.0
  %1995 = vmatpush.msra.mxu0 0.0
  %1996 = vmatpush.msra.mxu0 0.0
  %1997 = vmatpush.msra.mxu0 0.0
  %1998 = vmatpush.msra.mxu0 0.0
  %v1999 = vand.u32 %v441, 4294901760
  %2000 = vmatpush.msra.mxu0 %v1999
  %v2001 = vand.u32 %v440, 4294901760
  %2002 = vmatpush.msra.mxu0 %v2001
  %v2003 = vand.u32 %v439, 4294901760
  %2004 = vmatpush.msra.mxu0 %v2003
  %v2005 = vand.u32 %v438, 4294901760
  %2006 = vmatpush.msra.mxu0 %v2005
  %v2007 = vand.u32 %v1825, 4294901760
  %2008 = vmatmul.f32.gmra.mxu0 %v2007
  %v2009 = vpop.f32.mrf.mxu0
  %v2010 = vadd.f32 %v1985, %v2009
  %2011 = vdwg.mxu0
  %v2012 = vadd.f32 %v1821, %v2010
  %v2013 = vxor.u32 %v2012, 2147483648
  %v2014 = vmul.f32 %v2013, 1.442695
  %v2015 = vpow.pop %v2014
  %v2016 = vadd.f32 %v2015, 1.0
  %v2017 = vrcp.pop %v2016
  %v2018 = vmul.f32 %v2016, %v2017
  %v2019 = vsub.f32 1.0, %v2018
  %v2020 = vmul.f32 %v2017, %v2019
  %v2021 = vadd.f32 %v2017, %v2020
  %vm2022 = vweird.f32 %v2016
  %vm2023 = vweird.f32 %v2017
  %vm2024 = vmor %vm2022, %vm2023
  %v2025 = vsel %vm2024, %v2017, %v2021
  %v2026 = vand.u32 2147483647, %v2016
  %vm2027 = vcmp.eq.f32.partialorder %v2026, 8.507059e+37
  %v2028 = vand.u32 %v2016, 2147483648
  %v2029 = vor.u32 1.1754944e-38, %v2028
  %v2030 = vsel %vm2027, %v2029, %v2025
  %v2031 = vmul.f32 1.0, %v2030
  %v2032 = vmul.f32 %v2031, 2.0
  %v2033 = vsub.f32 %v2032, 1.0
  %v2034 = vmul.f32 %v2031, %v1814
  %2036 = vrot.lane.b32.xlu0 %v2033, 64
  %v2037 = vpop.permute.xlu0 %2036
  %v2039 = vmul.f32 %v2031, %v2037
  %2041 = vrot.lane.b32.xlu0 %v2039, 32
  %v2042 = vpop.permute.xlu0 %2041
  %v2044 = vadd.f32 %v2034, %v2042
  %v2045 = vtanh.pop %v2044
  %2047 = vrot.lane.b32.xlu0 %v2045, 64
  %v2048 = vpop.permute.xlu0 %2047
  %v2050 = vmul.f32 %v2031, %v2048
  %v2051 = vld [vmem:[#allocation2 + $0x38] sm:$0xff]
  %2053 = vrot.lane.b32.xlu0 %v2050, 32
  %v2054 = vpop.permute.xlu0 %2053
  %v2055 = vsel %vm443, %v2054, 0
  %2057 = vmatpush.msra.mxu0 0.0
  %2058 = vmatpush.msra.mxu0 0.0
  %2059 = vmatpush.msra.mxu0 0.0
  %2060 = vmatpush.msra.mxu0 0.0
  %2061 = vmatpush.msra.mxu0 0.0
  %2062 = vmatpush.msra.mxu0 0.0
  %2063 = vmatpush.msra.mxu0 0.0
  %2064 = vmatpush.msra.mxu0 0.0
  %2065 = vmatpush.msra.mxu0 0.0
  %2066 = vmatpush.msra.mxu0 0.0
  %2067 = vmatpush.msra.mxu0 0.0
  %2068 = vmatpush.msra.mxu0 0.0
  %v2069 = vand.u32 %v441, 4294901760
  %2070 = vmatpush.msra.mxu0 %v2069
  %v2071 = vand.u32 %v440, 4294901760
  %2072 = vmatpush.msra.mxu0 %v2071
  %v2073 = vand.u32 %v439, 4294901760
  %2074 = vmatpush.msra.mxu0 %v2073
  %v2075 = vand.u32 %v438, 4294901760
  %2076 = vmatpush.msra.mxu0 %v2075
  %v2077 = vand.u32 %v2055, 4294901760
  %v2078 = vsub.f32 %v2055, %v2077
  %v2079 = vand.u32 %v2078, 4294901760
  %v2080 = vsub.f32 %v2078, %v2079
  %v2081 = vand.u32 %v2080, 4294901760
  %2082 = vmatmul.f32.gmra.mxu0 %v2081
  %v2083 = vpop.f32.mrf.mxu0
  %v2084 = vadd.f32 0.0, %v2083
  %2085 = vdwg.mxu0
  %2086 = vmatpush.msra.mxu0 0.0
  %2087 = vmatpush.msra.mxu0 0.0
  %2088 = vmatpush.msra.mxu0 0.0
  %2089 = vmatpush.msra.mxu0 0.0
  %2090 = vmatpush.msra.mxu0 0.0
  %2091 = vmatpush.msra.mxu0 0.0
  %2092 = vmatpush.msra.mxu0 0.0
  %2093 = vmatpush.msra.mxu0 0.0
  %2094 = vmatpush.msra.mxu0 0.0
  %2095 = vmatpush.msra.mxu0 0.0
  %2096 = vmatpush.msra.mxu0 0.0
  %2097 = vmatpush.msra.mxu0 0.0
  %v2098 = vand.u32 %v441, 4294901760
  %v2099 = vsub.f32 %v441, %v2098
  %v2100 = vand.u32 %v2099, 4294901760
  %v2101 = vsub.f32 %v2099, %v2100
  %v2102 = vand.u32 %v2101, 4294901760
  %2103 = vmatpush.msra.mxu0 %v2102
  %v2104 = vand.u32 %v440, 4294901760
  %v2105 = vsub.f32 %v440, %v2104
  %v2106 = vand.u32 %v2105, 4294901760
  %v2107 = vsub.f32 %v2105, %v2106
  %v2108 = vand.u32 %v2107, 4294901760
  %2109 = vmatpush.msra.mxu0 %v2108
  %v2110 = vand.u32 %v439, 4294901760
  %v2111 = vsub.f32 %v439, %v2110
  %v2112 = vand.u32 %v2111, 4294901760
  %v2113 = vsub.f32 %v2111, %v2112
  %v2114 = vand.u32 %v2113, 4294901760
  %2115 = vmatpush.msra.mxu0 %v2114
  %v2116 = vand.u32 %v438, 4294901760
  %v2117 = vsub.f32 %v438, %v2116
  %v2118 = vand.u32 %v2117, 4294901760
  %v2119 = vsub.f32 %v2117, %v2118
  %v2120 = vand.u32 %v2119, 4294901760
  %2121 = vmatpush.msra.mxu0 %v2120
  %v2122 = vand.u32 %v2055, 4294901760
  %2123 = vmatmul.f32.gmra.mxu0 %v2122
  %v2124 = vpop.f32.mrf.mxu0
  %v2125 = vadd.f32 %v2084, %v2124
  %2126 = vdwg.mxu0
  %2127 = vmatpush.msra.mxu0 0.0
  %2128 = vmatpush.msra.mxu0 0.0
  %2129 = vmatpush.msra.mxu0 0.0
  %2130 = vmatpush.msra.mxu0 0.0
  %2131 = vmatpush.msra.mxu0 0.0
  %2132 = vmatpush.msra.mxu0 0.0
  %2133 = vmatpush.msra.mxu0 0.0
  %2134 = vmatpush.msra.mxu0 0.0
  %2135 = vmatpush.msra.mxu0 0.0
  %2136 = vmatpush.msra.mxu0 0.0
  %2137 = vmatpush.msra.mxu0 0.0
  %2138 = vmatpush.msra.mxu0 0.0
  %v2139 = vand.u32 %v441, 4294901760
  %v2140 = vsub.f32 %v441, %v2139
  %2141 = vmatpush.msra.mxu0 %v2140
  %v2142 = vand.u32 %v440, 4294901760
  %v2143 = vsub.f32 %v440, %v2142
  %2144 = vmatpush.msra.mxu0 %v2143
  %v2145 = vand.u32 %v439, 4294901760
  %v2146 = vsub.f32 %v439, %v2145
  %2147 = vmatpush.msra.mxu0 %v2146
  %v2148 = vand.u32 %v438, 4294901760
  %v2149 = vsub.f32 %v438, %v2148
  %2150 = vmatpush.msra.mxu0 %v2149
  %v2151 = vand.u32 %v2055, 4294901760
  %v2152 = vsub.f32 %v2055, %v2151
  %2153 = vmatmul.f32.gmra.mxu0 %v2152
  %v2154 = vpop.f32.mrf.mxu0
  %v2155 = vadd.f32 %v2125, %v2154
  %2156 = vdwg.mxu0
  %2157 = vmatpush.msra.mxu0 0.0
  %2158 = vmatpush.msra.mxu0 0.0
  %2159 = vmatpush.msra.mxu0 0.0
  %2160 = vmatpush.msra.mxu0 0.0
  %2161 = vmatpush.msra.mxu0 0.0
  %2162 = vmatpush.msra.mxu0 0.0
  %2163 = vmatpush.msra.mxu0 0.0
  %2164 = vmatpush.msra.mxu0 0.0
  %2165 = vmatpush.msra.mxu0 0.0
  %2166 = vmatpush.msra.mxu0 0.0
  %2167 = vmatpush.msra.mxu0 0.0
  %2168 = vmatpush.msra.mxu0 0.0
  %v2169 = vand.u32 %v441, 4294901760
  %2170 = vmatpush.msra.mxu0 %v2169
  %v2171 = vand.u32 %v440, 4294901760
  %2172 = vmatpush.msra.mxu0 %v2171
  %v2173 = vand.u32 %v439, 4294901760
  %2174 = vmatpush.msra.mxu0 %v2173
  %v2175 = vand.u32 %v438, 4294901760
  %2176 = vmatpush.msra.mxu0 %v2175
  %v2177 = vand.u32 %v2055, 4294901760
  %v2178 = vsub.f32 %v2055, %v2177
  %v2179 = vand.u32 %v2178, 4294901760
  %2180 = vmatmul.f32.gmra.mxu0 %v2179
  %v2181 = vpop.f32.mrf.mxu0
  %v2182 = vadd.f32 %v2155, %v2181
  %2183 = vdwg.mxu0
  %2184 = vmatpush.msra.mxu0 0.0
  %2185 = vmatpush.msra.mxu0 0.0
  %2186 = vmatpush.msra.mxu0 0.0
  %2187 = vmatpush.msra.mxu0 0.0
  %2188 = vmatpush.msra.mxu0 0.0
  %2189 = vmatpush.msra.mxu0 0.0
  %2190 = vmatpush.msra.mxu0 0.0
  %2191 = vmatpush.msra.mxu0 0.0
  %2192 = vmatpush.msra.mxu0 0.0
  %2193 = vmatpush.msra.mxu0 0.0
  %2194 = vmatpush.msra.mxu0 0.0
  %2195 = vmatpush.msra.mxu0 0.0
  %v2196 = vand.u32 %v441, 4294901760
  %v2197 = vsub.f32 %v441, %v2196
  %v2198 = vand.u32 %v2197, 4294901760
  %2199 = vmatpush.msra.mxu0 %v2198
  %v2200 = vand.u32 %v440, 4294901760
  %v2201 = vsub.f32 %v440, %v2200
  %v2202 = vand.u32 %v2201, 4294901760
  %2203 = vmatpush.msra.mxu0 %v2202
  %v2204 = vand.u32 %v439, 4294901760
  %v2205 = vsub.f32 %v439, %v2204
  %v2206 = vand.u32 %v2205, 4294901760
  %2207 = vmatpush.msra.mxu0 %v2206
  %v2208 = vand.u32 %v438, 4294901760
  %v2209 = vsub.f32 %v438, %v2208
  %v2210 = vand.u32 %v2209, 4294901760
  %2211 = vmatpush.msra.mxu0 %v2210
  %v2212 = vand.u32 %v2055, 4294901760
  %2213 = vmatmul.f32.gmra.mxu0 %v2212
  %v2214 = vpop.f32.mrf.mxu0
  %v2215 = vadd.f32 %v2182, %v2214
  %2216 = vdwg.mxu0
  %2217 = vmatpush.msra.mxu0 0.0
  %2218 = vmatpush.msra.mxu0 0.0
  %2219 = vmatpush.msra.mxu0 0.0
  %2220 = vmatpush.msra.mxu0 0.0
  %2221 = vmatpush.msra.mxu0 0.0
  %2222 = vmatpush.msra.mxu0 0.0
  %2223 = vmatpush.msra.mxu0 0.0
  %2224 = vmatpush.msra.mxu0 0.0
  %2225 = vmatpush.msra.mxu0 0.0
  %2226 = vmatpush.msra.mxu0 0.0
  %2227 = vmatpush.msra.mxu0 0.0
  %2228 = vmatpush.msra.mxu0 0.0
  %v2229 = vand.u32 %v441, 4294901760
  %2230 = vmatpush.msra.mxu0 %v2229
  %v2231 = vand.u32 %v440, 4294901760
  %2232 = vmatpush.msra.mxu0 %v2231
  %v2233 = vand.u32 %v439, 4294901760
  %2234 = vmatpush.msra.mxu0 %v2233
  %v2235 = vand.u32 %v438, 4294901760
  %2236 = vmatpush.msra.mxu0 %v2235
  %v2237 = vand.u32 %v2055, 4294901760
  %2238 = vmatmul.f32.gmra.mxu0 %v2237
  %v2239 = vpop.f32.mrf.mxu0
  %v2240 = vadd.f32 %v2215, %v2239
  %2241 = vdwg.mxu0
  %v2242 = vadd.f32 %v2051, %v2240
  %v2243 = vxor.u32 %v2242, 2147483648
  %v2244 = vmul.f32 %v2243, 1.442695
  %v2245 = vpow.pop %v2244
  %v2246 = vadd.f32 %v2245, 1.0
  %v2247 = vrcp.pop %v2246
  %v2248 = vmul.f32 %v2246, %v2247
  %v2249 = vsub.f32 1.0, %v2248
  %v2250 = vmul.f32 %v2247, %v2249
  %v2251 = vadd.f32 %v2247, %v2250
  %vm2252 = vweird.f32 %v2246
  %vm2253 = vweird.f32 %v2247
  %vm2254 = vmor %vm2252, %vm2253
  %v2255 = vsel %vm2254, %v2247, %v2251
  %v2256 = vand.u32 2147483647, %v2246
  %vm2257 = vcmp.eq.f32.partialorder %v2256, 8.507059e+37
  %v2258 = vand.u32 %v2246, 2147483648
  %v2259 = vor.u32 1.1754944e-38, %v2258
  %v2260 = vsel %vm2257, %v2259, %v2255
  %v2261 = vmul.f32 1.0, %v2260
  %v2262 = vmul.f32 %v2261, 2.0
  %v2263 = vsub.f32 %v2262, 1.0
  %v2264 = vmul.f32 %v2261, %v2044
  %2266 = vrot.lane.b32.xlu0 %v2263, 64
  %v2267 = vpop.permute.xlu0 %2266
  %v2269 = vmul.f32 %v2261, %v2267
  %2271 = vrot.lane.b32.xlu0 %v2269, 32
  %v2272 = vpop.permute.xlu0 %2271
  %v2274 = vadd.f32 %v2264, %v2272
  %v2275 = vtanh.pop %v2274
  %2277 = vrot.lane.b32.xlu0 %v2275, 64
  %v2278 = vpop.permute.xlu0 %2277
  %v2280 = vmul.f32 %v2261, %v2278
  %v2281 = vld [vmem:[%s4] sm:$0x1]
  %v2283 = vperm.slane %v2281, 0
  %2284 = vrot.lane.b32.xlu0 %v2283, 96
  %v2285 = vpop.permute.xlu0 %2284
  %v2287 = vmul.f32 %v2280, %v2285
  %2289 = vrot.lane.b32.xlu0 %v2287, 32
  %v2290 = vpop.permute.xlu0 %2289
  %v2292 = vsel %vm443, %v2290, 0.0
  %2293 = vadd.xlane.f32.xlu0 %v2292
  %v2294 = vpop.xlane.xlu0 %2293
  %v2295 = vld [vmem:[#allocation3] sm:$0x1]
  %v2297 = vperm.slane %v2295, 0
  %v2299 = vadd.f32 %v2294, %v2297
  %vm2300 = vcmask 7168
  %2301 = vst.msk [vmem:[%s6] sm:$0xff] %vm2300, %v2299
  // Predicated region
  $region26: #{tpu_custom_call.1} parent=0 // pred_check
    _
  $region27: #{tpu_custom_call.1} parent=0 // pred_check_branch
    %2303 = sbr.rel (0) target = $region29
  $region28: #{tpu_custom_call.1} parent=0 // pred_region
    _
  $region29: #{tpu_custom_call.1} parent=0 // pred_fallthru
    _
  // Predicated region
  $region30: #{tpu_custom_call.1} parent=0 // pred_check
    _
  $region31: #{tpu_custom_call.1} parent=0 // pred_check_branch
    %2305 = sbr.rel (0) target = $region33
  $region32: #{tpu_custom_call.1} parent=0 // pred_region
    _
  $region33: #{tpu_custom_call.1} parent=0 // pred_fallthru
    _

</llo_original>
